<compile_context>
chip_gen: v5e
topology: v5e:2x2
jax: 0.10.0
libtpu: 0.0.40
codegen_flags: <defaults>
</compile_context>

<pallas_src>
import functools

import numpy as np

import jax
import jax.numpy as jnp
from jax.experimental import pallas as pl
from jax.experimental.pallas import tpu as pltpu


# ----------------------------------------------------------------------------
# Wrapper-side (trace-time) weight preparation.
# ----------------------------------------------------------------------------
def _fold_bn(gamma, beta, mean, var, eps=1e-5):
    scale = gamma / jnp.sqrt(var + eps)
    bias = beta - mean * scale
    return scale, bias


def _build_conv_band(w_oihw, scale, *, w_in, w_out, stride):
    """Block-banded weight matrices for a 3x3 'same' conv on a row-fused layout.

    The activation rows are laid out as
        xf[n, r, p*w_in*Cin + w*Cin + ci] = x[n, stride*r + p, w, ci]
    and the padded scratch has one extra zero row on top (row 0), so that the
    conv output row h_o is
        out_row(h_o) = sum_j  xpad_row(h_o + j) @ band[j]
    Zero padding in W, the W-stride and the BatchNorm scale are folded into
    `band`; zero padding in H is handled by the scratch's zero halo rows.
    """
    Cout, Cin, KH, KW = w_oihw.shape
    n_taps = (KH - 2) // stride + 2          # 3 for stride 1, 2 for stride 2
    K = stride * w_in * Cin
    Ncol = w_out * Cout

    # Fold the BN scale into the conv weights (f32, before any bf16 cast).
    wsc = jnp.transpose(w_oihw * scale[:, None, None, None], (2, 3, 1, 0))
    # wsc[kh, kw, ci, co]

    ci_g, co_g = np.meshgrid(np.arange(Cin), np.arange(Cout), indexing="ij")
    taps, rows, cols, khs, kws = [], [], [], [], []
    for j in range(n_taps):
        for p in range(stride):
            kh = stride * (j - 1) + p + 1
            if not 0 <= kh < KH:
                continue
            for kw in range(KW):
                for wo in range(w_out):
                    wi = stride * wo + kw - 1
                    if not 0 <= wi < w_in:
                        continue                       # zero padding in W
                    taps.append(np.full_like(ci_g, j))
                    rows.append((p * w_in + wi) * Cin + ci_g)
                    cols.append(wo * Cout + co_g)
                    khs.append(np.full_like(ci_g, kh))
                    kws.append(np.full_like(ci_g, kw))
    taps = np.stack(taps)
    rows = np.stack(rows)
    cols = np.stack(cols)
    khs = np.stack(khs)
    kws = np.stack(kws)
    ci_b = np.broadcast_to(ci_g, khs.shape)
    co_b = np.broadcast_to(co_g, khs.shape)
    vals = wsc[khs, kws, ci_b, co_b]                   # traced gather, static idx
    band = jnp.zeros((n_taps, K, Ncol), jnp.float32)
    return band.at[taps, rows, cols].set(vals)


def _build_shortcut_select(cin, planes, w_in, w_out):
    """Option-A shortcut as a 0/1 selection matrix on the fused row layout.

    res[h_o, wo*planes + planes//4 + ci] = x[2*h_o, 2*wo, ci]
    (the row decimation is handled by which scratch rows the kernel feeds in).
    """
    K = 2 * w_in * cin
    sel = np.zeros((K, w_out * planes), np.float32)
    pad_lo = planes // 4
    for wo in range(w_out):
        base_in = (2 * wo) * cin          # p=0 half of the fused row, column 2*wo
        base_out = wo * planes + pad_lo
        for ci in range(cin):
            sel[base_in + ci, base_out + ci] = 1.0
    return jnp.asarray(sel)


def _pick_batch_block(n, cap=16):
    """Largest batch block <= cap dividing n, preferring an even step count >= 2
    (load-balances the two v7x TensorCores on the 'parallel' grid axis)."""
    best, best_key = 1, (False, 1)
    for nb in range(1, min(cap, n) + 1):
        if n % nb:
            continue
        steps = n // nb
        key = (steps >= 2 and steps % 2 == 0, nb)
        if key > best_key:
            best, best_key = nb, key
    return best


# ----------------------------------------------------------------------------
# Kernel.
# ----------------------------------------------------------------------------
def _cbasic_block_body(x_ref, wb1_ref, wb2_ref, ws_ref, b1_ref, b2_ref, o_ref,
                       xpad_ref, mid_ref, *, n_taps1):
    """Fused CIFAR basic block for a block of `nb` batch elements.

    x_ref   : (nb, Hf, K1)        input, fused rows (K1 = stride*W*Cin), compute dtype
    wb1_ref : (n_taps1, K1, WP)   conv1 band weights (BN1 scale folded), WP = Wout*planes
    wb2_ref : (3, WP, WP)         conv2 band weights (BN2 scale folded)
    ws_ref  : (K1, WP) or None    option-A shortcut selection matrix
    b*_ref  : (1, WP)             BN biases tiled to the fused layout (f32)
    o_ref   : (nb, Hout, WP)      lane-dense output block
    xpad_ref: (nb, Hf+n_taps1-1, K1)  H-halo-padded input scratch (compute dtype)
    mid_ref : (nb, Hout+2, WP)        H-halo-padded conv1 activation scratch
    """
    nb, Hout, WP = o_ref.shape
    _, Hf, K1 = x_ref.shape
    M = nb * Hout

    # ---- stage 0: stage the input; zero ONLY the 1-row H halo (the interior
    # is fully overwritten every step; no program_id gating -> megacore safe).
    zrow = jnp.zeros((nb, 1, K1), xpad_ref.dtype)
    xpad_ref[:, 0:1, :] = zrow
    if xpad_ref.shape[1] == Hf + 2:               # stride-1 layout: bottom halo too
        xpad_ref[:, Hf + 1:Hf + 2, :] = zrow
    xpad_ref[:, 1:Hf + 1, :] = x_ref[...].astype(xpad_ref.dtype)

    # ---- stage 1: conv1 (+ folded BN1 scale) as n_taps1 banded matmuls ------
    acc = None
    for j in range(n_taps1):
        rows = xpad_ref[:, j:j + Hout, :].reshape(M, K1)
        d = jnp.dot(rows, wb1_ref[j], preferred_element_type=jnp.float32)
        acc = d if acc is None else acc + d
    h = jnp.maximum(acc + b1_ref[...], 0.0)       # bias + relu epilogue (f32)

    # ---- stage 2: conv1 activation stays in VMEM (H-padded for conv2) -------
    zrow2 = jnp.zeros((nb, 1, WP), mid_ref.dtype)
    mid_ref[:, 0:1, :] = zrow2
    mid_ref[:, Hout + 1:Hout + 2, :] = zrow2
    mid_ref[:, 1:Hout + 1, :] = h.reshape(nb, Hout, WP).astype(mid_ref.dtype)

    # ---- stage 3: conv2 (+ folded BN2 scale) --------------------------------
    acc2 = None
    for j in range(3):
        rows = mid_ref[:, j:j + Hout, :].reshape(M, WP)
        d = jnp.dot(rows, wb2_ref[j], preferred_element_type=jnp.float32)
        acc2 = d if acc2 is None else acc2 + d

    # ---- stage 4: shortcut + final relu, lane-dense output store ------------
    if ws_ref is None:
        # identity shortcut: x tile is already in the fused output layout.
        res = x_ref[...].reshape(M, WP).astype(jnp.float32)
    else:
        # option 'A': ::2 spatial decimation + channel zero-pad, expressed as a
        # 0/1 selection matmul (no concatenate / zero buffers; MXU has slack).
        rows = xpad_ref[:, 1:1 + Hout, :].reshape(M, K1)
        res = jnp.dot(rows, ws_ref[...], preferred_element_type=jnp.float32)
    out = jnp.maximum(acc2 + b2_ref[...] + res, 0.0)
    o_ref[...] = out.reshape(nb, Hout, WP).astype(o_ref.dtype)


def _kernel_identity(x_ref, wb1_ref, wb2_ref, b1_ref, b2_ref, o_ref,
                     xpad_ref, mid_ref, *, n_taps1):
    _cbasic_block_body(x_ref, wb1_ref, wb2_ref, None, b1_ref, b2_ref, o_ref,
                       xpad_ref, mid_ref, n_taps1=n_taps1)


def _kernel_downsample(x_ref, wb1_ref, wb2_ref, ws_ref, b1_ref, b2_ref, o_ref,
                       xpad_ref, mid_ref, *, n_taps1):
    _cbasic_block_body(x_ref, wb1_ref, wb2_ref, ws_ref, b1_ref, b2_ref, o_ref,
                       xpad_ref, mid_ref, n_taps1=n_taps1)


# ----------------------------------------------------------------------------
# Wrapper.
# ----------------------------------------------------------------------------
def cbasic_block_forward(x_nchw, params, *, stride=1, option="A",
                         compute_dtype=jnp.bfloat16, batch_block=None):
    """CBasicBlock forward.  x: (N, Cin, H, W) f32 -> (N, planes, H//s, W//s)."""
    N, Cin, H, W = x_nchw.shape
    planes = params["w1"].shape[0]
    assert H % stride == 0 and W % stride == 0
    Hout, Wout = H // stride, W // stride
    WP = Wout * planes

    identity = (stride == 1 and Cin == planes)
    if not identity:
        if option != "A":
            # TODO(synk): option 'B' (1x1 conv + BN shortcut) not implemented.
            raise NotImplementedError("option B shortcut not implemented")
        assert stride == 2 and Cin + 2 * (planes // 4) == planes, (
            "option-A shortcut requires stride=2 and planes == 2*in_planes")

    # NCHW -> NHWC -> fused row layout (stride rows x W x C in the lane dim).
    # Cast once here (halves the input HBM DMA for the bf16 perf path).
    Hf = H // stride
    K1 = stride * W * Cin
    x = jnp.transpose(x_nchw, (0, 2, 3, 1))               # (N, H, W, Cin)
    xf = x.reshape(N, Hf, K1).astype(compute_dtype)        # free reshape

    s1, b1 = _fold_bn(params["bn1_gamma"], params["bn1_beta"],
                      params["bn1_mean"], params["bn1_var"])
    s2, b2 = _fold_bn(params["bn2_gamma"], params["bn2_beta"],
                      params["bn2_mean"], params["bn2_var"])

    # Band weights with the BN scales folded in (built in f32, cast once).
    wb1 = _build_conv_band(params["w1"], s1, w_in=W, w_out=Wout,
                           stride=stride).astype(compute_dtype)
    wb2 = _build_conv_band(params["w2"], s2, w_in=Wout, w_out=Wout,
                           stride=1).astype(compute_dtype)
    n_taps1 = wb1.shape[0]

    # Biases tiled to the fused (Wout*planes) layout; epilogue is add-only.
    b1t = jnp.tile(b1.astype(jnp.float32), Wout).reshape(1, WP)
    b2t = jnp.tile(b2.astype(jnp.float32), Wout).reshape(1, WP)

    nb = batch_block if batch_block is not None else _pick_batch_block(N)
    assert N % nb == 0

    inputs = [xf, wb1, wb2]
    in_specs = [
        pl.BlockSpec((nb, Hf, K1), lambda n: (n, 0, 0)),
        pl.BlockSpec((n_taps1, K1, WP), lambda n: (0, 0, 0)),
        pl.BlockSpec((3, WP, WP), lambda n: (0, 0, 0)),
    ]
    sel_bytes = 0
    if identity:
        kernel = functools.partial(_kernel_identity, n_taps1=n_taps1)
    else:
        ws_sel = _build_shortcut_select(Cin, planes, W, Wout).astype(compute_dtype)
        inputs.append(ws_sel)
        in_specs.append(pl.BlockSpec((K1, WP), lambda n: (0, 0)))
        sel_bytes = ws_sel.size * jnp.dtype(compute_dtype).itemsize
        kernel = functools.partial(_kernel_downsample, n_taps1=n_taps1)
    inputs += [b1t, b2t]
    in_specs += [pl.BlockSpec((1, WP), lambda n: (0, 0)),
                 pl.BlockSpec((1, WP), lambda n: (0, 0))]

    # VMEM budget computed from the actual working set (double-buffered blocks
    # + persistent scratch + f32 temporaries), with 2x headroom.  At the
    # default nb cap (16) and CIFAR sizes this stays far below the 32 MiB
    # floor; on v7x (64 MiB VMEM/TC) lower `batch_block` if this grows.
    cdb = jnp.dtype(compute_dtype).itemsize
    odb = jnp.dtype(x_nchw.dtype).itemsize
    block_bytes = (nb * Hf * K1 * cdb + nb * Hout * WP * odb
                   + wb1.size * cdb + wb2.size * cdb + sel_bytes + 2 * WP * 4)
    scratch_bytes = (nb * (Hf + n_taps1 - 1) * K1 + nb * (Hout + 2) * WP) * cdb
    interm_bytes = 6 * nb * Hout * WP * 4
    needed = 2 * block_bytes + scratch_bytes + interm_bytes
    vmem_limit = int(min(max(32 * 2 ** 20, 2 * needed), 96 * 2 ** 20))

    out_fused = pl.pallas_call(
        kernel,
        out_shape=jax.ShapeDtypeStruct((N, Hout, WP), x_nchw.dtype),
        grid_spec=pltpu.PrefetchScalarGridSpec(
            num_scalar_prefetch=0,
            grid=(N // nb,),
            in_specs=in_specs,
            out_specs=pl.BlockSpec((nb, Hout, WP), lambda n: (n, 0, 0)),
            scratch_shapes=[
                pltpu.VMEM((nb, Hf + n_taps1 - 1, K1), compute_dtype),
                pltpu.VMEM((nb, Hout + 2, WP), compute_dtype),
            ],
        ),
        compiler_params=pltpu.CompilerParams(
            dimension_semantics=("parallel",),
            vmem_limit_bytes=vmem_limit,
        ),
    )(*inputs)

    # (N, Hout, Wout*planes) -> NCHW once at the module boundary.
    out = out_fused.reshape(N, Hout, Wout, planes)
    return jnp.transpose(out, (0, 3, 1, 2))


# ----------------------------------------------------------------------------
# Pure-JAX reference (lax conv) for correctness checking.
# ----------------------------------------------------------------------------
def _reference_forward(x_nchw, params, *, stride=1):
    in_planes = x_nchw.shape[1]
    planes = params["w1"].shape[0]
    x = jnp.transpose(x_nchw, (0, 2, 3, 1))
    w1 = jnp.transpose(params["w1"], (2, 3, 1, 0))
    w2 = jnp.transpose(params["w2"], (2, 3, 1, 0))
    dn = ("NHWC", "HWIO", "NHWC")

    def bn(y, g, b, m, v, eps=1e-5):
        return (y - m) / jnp.sqrt(v + eps) * g + b

    out = jax.lax.conv_general_dilated(x, w1, (stride, stride),
                                       ((1, 1), (1, 1)), dimension_numbers=dn)
    out = jax.nn.relu(bn(out, params["bn1_gamma"], params["bn1_beta"],
                         params["bn1_mean"], params["bn1_var"]))
    out = jax.lax.conv_general_dilated(out, w2, (1, 1),
                                       ((1, 1), (1, 1)), dimension_numbers=dn)
    out = bn(out, params["bn2_gamma"], params["bn2_beta"],
             params["bn2_mean"], params["bn2_var"])
    if stride != 1 or in_planes != planes:
        sc = x_nchw[:, :, ::2, ::2]
        pad_c = planes // 4
        sc = jnp.pad(sc, ((0, 0), (pad_c, pad_c), (0, 0), (0, 0)))
        shortcut = jnp.transpose(sc, (0, 2, 3, 1))
    else:
        shortcut = x
    out = jax.nn.relu(out + shortcut)
    return jnp.transpose(out, (0, 3, 1, 2))


def make_params(key, in_planes, planes):
    ks = jax.random.split(key, 8)
    fan1 = in_planes * 9
    fan2 = planes * 9
    return {
        "w1": jax.random.normal(ks[0], (planes, in_planes, 3, 3),
                                jnp.float32) * (2.0 / fan1) ** 0.5,
        "w2": jax.random.normal(ks[1], (planes, planes, 3, 3),
                                jnp.float32) * (2.0 / fan2) ** 0.5,
        "bn1_gamma": 1.0 + 0.1 * jax.random.normal(ks[2], (planes,), jnp.float32),
        "bn1_beta": 0.1 * jax.random.normal(ks[3], (planes,), jnp.float32),
        "bn1_mean": 0.05 * jax.random.normal(ks[4], (planes,), jnp.float32),
        "bn1_var": 0.9 + 0.1 * jax.random.uniform(ks[5], (planes,), jnp.float32),
        "bn2_gamma": 1.0 + 0.1 * jax.random.normal(ks[6], (planes,), jnp.float32),
        "bn2_beta": 0.1 * jax.random.normal(ks[7], (planes,), jnp.float32),
        "bn2_mean": jnp.zeros((planes,), jnp.float32),
        "bn2_var": jnp.ones((planes,), jnp.float32),
    }


if __name__ == "__main__":
    key = jax.random.PRNGKey(0)
    k1, k2, k3, k4 = jax.random.split(key, 4)

    # ---- config 1: identity shortcut (stride 1, in_planes == planes) -------
    N, C, H, W = 8, 16, 16, 16
    planes, stride = 16, 1
    x = jax.random.normal(k1, (N, C, H, W), jnp.float32)
    params = make_params(k2, C, planes)
    ref = jax.block_until_ready(_reference_forward(x, params, stride=stride))

    out_f32 = jax.block_until_ready(
        cbasic_block_forward(x, params, stride=stride,
                             compute_dtype=jnp.float32))
    assert out_f32.shape == (N, planes, H, W)
    assert jnp.allclose(out_f32, ref, atol=2e-4, rtol=2e-4), (
        float(jnp.max(jnp.abs(out_f32 - ref))))

    out_bf16 = jax.block_until_ready(
        cbasic_block_forward(x, params, stride=stride,
                             compute_dtype=jnp.bfloat16))
    assert float(jnp.max(jnp.abs(out_bf16 - ref))) < 6e-2

    # ---- config 2: option-A downsampling shortcut (stride 2, planes=2*Cin) -
    planes2, stride2 = 32, 2
    x2 = jax.random.normal(k3, (N, C, H, W), jnp.float32)
    params2 = make_params(k4, C, planes2)
    ref2 = jax.block_until_ready(_reference_forward(x2, params2, stride=stride2))

    out2_f32 = jax.block_until_ready(
        cbasic_block_forward(x2, params2, stride=stride2,
                             compute_dtype=jnp.float32))
    assert out2_f32.shape == (N, planes2, H // 2, W // 2)
    assert jnp.allclose(out2_f32, ref2, atol=2e-4, rtol=2e-4), (
        float(jnp.max(jnp.abs(out2_f32 - ref2))))

    out2_bf16 = jax.block_until_ready(
        cbasic_block_forward(x2, params2, stride=stride2,
                             compute_dtype=jnp.bfloat16))
    assert float(jnp.max(jnp.abs(out2_bf16 - ref2))) < 6e-2

    print("KERNEL_OK")
</pallas_src>

<mosaic_0001>
module attributes {stable_mosaic.version = 11 : i64} {
  func.func @_kernel_identity(%arg0: i32, %arg1: memref<4x16x256xf32, #tpu.memory_space<vmem>>, %arg2: memref<3x256x256xf32, #tpu.memory_space<vmem>>, %arg3: memref<3x256x256xf32, #tpu.memory_space<vmem>>, %arg4: memref<1x256xf32, #tpu.memory_space<vmem>>, %arg5: memref<1x256xf32, #tpu.memory_space<vmem>>, %arg6: memref<4x16x256xf32, #tpu.memory_space<vmem>>, %arg7: memref<4x18x256xf32, #tpu.memory_space<vmem>>, %arg8: memref<4x18x256xf32, #tpu.memory_space<vmem>>) attributes {dimension_semantics = [#tpu.dimension_semantics<parallel>], iteration_bounds = array<i64: 2>, scalar_prefetch = 0 : i64, scratch_operands = 2 : i64, tpu.core_type = #tpu.core_type<tc>, window_params = [{transform_indices = @transform_0, window_bounds = array<i64: 4, 16, 256>}, {pipeline_mode = #tpu.pipeline_mode<synchronous>, transform_indices = @transform_1, window_bounds = array<i64: 3, 256, 256>}, {pipeline_mode = #tpu.pipeline_mode<synchronous>, transform_indices = @transform_2, window_bounds = array<i64: 3, 256, 256>}, {pipeline_mode = #tpu.pipeline_mode<synchronous>, transform_indices = @transform_3, window_bounds = array<i64: 1, 256>}, {pipeline_mode = #tpu.pipeline_mode<synchronous>, transform_indices = @transform_4, window_bounds = array<i64: 1, 256>}, {transform_indices = @transform_5, window_bounds = array<i64: 4, 16, 256>}]} {
    %cst = arith.constant 0.000000e+00 : f32
    %0 = vector.broadcast %cst : f32 to vector<4x1x256xf32>
    %c0 = arith.constant 0 : index
    %c0_0 = arith.constant 0 : index
    %c0_1 = arith.constant 0 : index
    %1 = vector.load %arg7[%c0, %c0_0, %c0_1] : memref<4x18x256xf32, #tpu.memory_space<vmem>>, vector<4x1x256xf32>
    tpu.vector_store %arg7[%c0, %c0_0, %c0_1], %0 {strides = array<i32>} : memref<4x18x256xf32, #tpu.memory_space<vmem>>, vector<4x1x256xf32>,
    %c0_2 = arith.constant 0 : index
    %c17 = arith.constant 17 : index
    %c0_3 = arith.constant 0 : index
    %2 = vector.load %arg7[%c0_2, %c17, %c0_3] : memref<4x18x256xf32, #tpu.memory_space<vmem>>, vector<4x1x256xf32>
    tpu.vector_store %arg7[%c0_2, %c17, %c0_3], %0 {strides = array<i32>} : memref<4x18x256xf32, #tpu.memory_space<vmem>>, vector<4x1x256xf32>,
    %c0_4 = arith.constant 0 : index
    %c0_5 = arith.constant 0 : index
    %c0_6 = arith.constant 0 : index
    %3 = vector.load %arg1[%c0_4, %c0_5, %c0_6] : memref<4x16x256xf32, #tpu.memory_space<vmem>>, vector<4x16x256xf32>
    %c0_7 = arith.constant 0 : index
    %c1 = arith.constant 1 : index
    %c0_8 = arith.constant 0 : index
    %4 = vector.load %arg7[%c0_7, %c1, %c0_8] : memref<4x18x256xf32, #tpu.memory_space<vmem>>, vector<4x16x256xf32>
    tpu.vector_store %arg7[%c0_7, %c1, %c0_8], %3 {strides = array<i32>} : memref<4x18x256xf32, #tpu.memory_space<vmem>>, vector<4x16x256xf32>,
    %c0_9 = arith.constant 0 : index
    %c0_10 = arith.constant 0 : index
    %c0_11 = arith.constant 0 : index
    %5 = vector.load %arg7[%c0_9, %c0_10, %c0_11] : memref<4x18x256xf32, #tpu.memory_space<vmem>>, vector<4x16x256xf32>
    %6 = vector.shape_cast %5 : vector<4x16x256xf32> to vector<64x256xf32>
    %c0_12 = arith.constant 0 : index
    %c0_13 = arith.constant 0 : index
    %c0_14 = arith.constant 0 : index
    %7 = vector.load %arg2[%c0_12, %c0_13, %c0_14] : memref<3x256x256xf32, #tpu.memory_space<vmem>>, vector<1x256x256xf32>
    %8 = vector.shape_cast %7 : vector<1x256x256xf32> to vector<256x256xf32>
    %cst_15 = arith.constant dense<0.000000e+00> : vector<64x256xf32>
    %9 = tpu.matmul %6, %8, %cst_15 {dimension_numbers = #tpu.dot_dimension_numbers<[1], [0], [0], [1], [0, 0, 1, 1], [], []>} : vector<64x256xf32>, vector<256x256xf32>, vector<64x256xf32> -> vector<64x256xf32>
    %c0_16 = arith.constant 0 : index
    %c1_17 = arith.constant 1 : index
    %c0_18 = arith.constant 0 : index
    %10 = vector.load %arg7[%c0_16, %c1_17, %c0_18] : memref<4x18x256xf32, #tpu.memory_space<vmem>>, vector<4x16x256xf32>
    %11 = vector.shape_cast %10 : vector<4x16x256xf32> to vector<64x256xf32>
    %c1_19 = arith.constant 1 : index
    %c0_20 = arith.constant 0 : index
    %c0_21 = arith.constant 0 : index
    %12 = vector.load %arg2[%c1_19, %c0_20, %c0_21] : memref<3x256x256xf32, #tpu.memory_space<vmem>>, vector<1x256x256xf32>
    %13 = vector.shape_cast %12 : vector<1x256x256xf32> to vector<256x256xf32>
    %cst_22 = arith.constant dense<0.000000e+00> : vector<64x256xf32>
    %14 = tpu.matmul %11, %13, %cst_22 {dimension_numbers = #tpu.dot_dimension_numbers<[1], [0], [0], [1], [0, 0, 1, 1], [], []>} : vector<64x256xf32>, vector<256x256xf32>, vector<64x256xf32> -> vector<64x256xf32>
    %15 = arith.addf %9, %14 : vector<64x256xf32>
    %c0_23 = arith.constant 0 : index
    %c2 = arith.constant 2 : index
    %c0_24 = arith.constant 0 : index
    %16 = vector.load %arg7[%c0_23, %c2, %c0_24] : memref<4x18x256xf32, #tpu.memory_space<vmem>>, vector<4x16x256xf32>
    %17 = vector.shape_cast %16 : vector<4x16x256xf32> to vector<64x256xf32>
    %c2_25 = arith.constant 2 : index
    %c0_26 = arith.constant 0 : index
    %c0_27 = arith.constant 0 : index
    %18 = vector.load %arg2[%c2_25, %c0_26, %c0_27] : memref<3x256x256xf32, #tpu.memory_space<vmem>>, vector<1x256x256xf32>
    %19 = vector.shape_cast %18 : vector<1x256x256xf32> to vector<256x256xf32>
    %cst_28 = arith.constant dense<0.000000e+00> : vector<64x256xf32>
    %20 = tpu.matmul %17, %19, %cst_28 {dimension_numbers = #tpu.dot_dimension_numbers<[1], [0], [0], [1], [0, 0, 1, 1], [], []>} : vector<64x256xf32>, vector<256x256xf32>, vector<64x256xf32> -> vector<64x256xf32>
    %21 = arith.addf %15, %20 : vector<64x256xf32>
    %c0_29 = arith.constant 0 : index
    %c0_30 = arith.constant 0 : index
    %22 = vector.load %arg4[%c0_29, %c0_30] : memref<1x256xf32, #tpu.memory_space<vmem>>, vector<1x256xf32>
    %23 = vector.broadcast %22 : vector<1x256xf32> to vector<64x256xf32>
    %24 = arith.addf %21, %23 : vector<64x256xf32>
    %cst_31 = arith.constant 0.000000e+00 : f32
    %25 = vector.broadcast %cst_31 : f32 to vector<64x256xf32>
    %26 = arith.maximumf %24, %25 : vector<64x256xf32>
    %cst_32 = arith.constant 0.000000e+00 : f32
    %27 = vector.broadcast %cst_32 : f32 to vector<4x1x256xf32>
    %c0_33 = arith.constant 0 : index
    %c0_34 = arith.constant 0 : index
    %c0_35 = arith.constant 0 : index
    %28 = vector.load %arg8[%c0_33, %c0_34, %c0_35] : memref<4x18x256xf32, #tpu.memory_space<vmem>>, vector<4x1x256xf32>
    tpu.vector_store %arg8[%c0_33, %c0_34, %c0_35], %27 {strides = array<i32>} : memref<4x18x256xf32, #tpu.memory_space<vmem>>, vector<4x1x256xf32>,
    %c0_36 = arith.constant 0 : index
    %c17_37 = arith.constant 17 : index
    %c0_38 = arith.constant 0 : index
    %29 = vector.load %arg8[%c0_36, %c17_37, %c0_38] : memref<4x18x256xf32, #tpu.memory_space<vmem>>, vector<4x1x256xf32>
    tpu.vector_store %arg8[%c0_36, %c17_37, %c0_38], %27 {strides = array<i32>} : memref<4x18x256xf32, #tpu.memory_space<vmem>>, vector<4x1x256xf32>,
    %30 = vector.shape_cast %26 : vector<64x256xf32> to vector<4x16x256xf32>
    %c0_39 = arith.constant 0 : index
    %c1_40 = arith.constant 1 : index
    %c0_41 = arith.constant 0 : index
    %31 = vector.load %arg8[%c0_39, %c1_40, %c0_41] : memref<4x18x256xf32, #tpu.memory_space<vmem>>, vector<4x16x256xf32>
    tpu.vector_store %arg8[%c0_39, %c1_40, %c0_41], %30 {strides = array<i32>} : memref<4x18x256xf32, #tpu.memory_space<vmem>>, vector<4x16x256xf32>,
    %c0_42 = arith.constant 0 : index
    %c0_43 = arith.constant 0 : index
    %c0_44 = arith.constant 0 : index
    %32 = vector.load %arg8[%c0_42, %c0_43, %c0_44] : memref<4x18x256xf32, #tpu.memory_space<vmem>>, vector<4x16x256xf32>
    %33 = vector.shape_cast %32 : vector<4x16x256xf32> to vector<64x256xf32>
    %c0_45 = arith.constant 0 : index
    %c0_46 = arith.constant 0 : index
    %c0_47 = arith.constant 0 : index
    %34 = vector.load %arg3[%c0_45, %c0_46, %c0_47] : memref<3x256x256xf32, #tpu.memory_space<vmem>>, vector<1x256x256xf32>
    %35 = vector.shape_cast %34 : vector<1x256x256xf32> to vector<256x256xf32>
    %cst_48 = arith.constant dense<0.000000e+00> : vector<64x256xf32>
    %36 = tpu.matmul %33, %35, %cst_48 {dimension_numbers = #tpu.dot_dimension_numbers<[1], [0], [0], [1], [0, 0, 1, 1], [], []>} : vector<64x256xf32>, vector<256x256xf32>, vector<64x256xf32> -> vector<64x256xf32>
    %c0_49 = arith.constant 0 : index
    %c1_50 = arith.constant 1 : index
    %c0_51 = arith.constant 0 : index
    %37 = vector.load %arg8[%c0_49, %c1_50, %c0_51] : memref<4x18x256xf32, #tpu.memory_space<vmem>>, vector<4x16x256xf32>
    %38 = vector.shape_cast %37 : vector<4x16x256xf32> to vector<64x256xf32>
    %c1_52 = arith.constant 1 : index
    %c0_53 = arith.constant 0 : index
    %c0_54 = arith.constant 0 : index
    %39 = vector.load %arg3[%c1_52, %c0_53, %c0_54] : memref<3x256x256xf32, #tpu.memory_space<vmem>>, vector<1x256x256xf32>
    %40 = vector.shape_cast %39 : vector<1x256x256xf32> to vector<256x256xf32>
    %cst_55 = arith.constant dense<0.000000e+00> : vector<64x256xf32>
    %41 = tpu.matmul %38, %40, %cst_55 {dimension_numbers = #tpu.dot_dimension_numbers<[1], [0], [0], [1], [0, 0, 1, 1], [], []>} : vector<64x256xf32>, vector<256x256xf32>, vector<64x256xf32> -> vector<64x256xf32>
    %42 = arith.addf %36, %41 : vector<64x256xf32>
    %c0_56 = arith.constant 0 : index
    %c2_57 = arith.constant 2 : index
    %c0_58 = arith.constant 0 : index
    %43 = vector.load %arg8[%c0_56, %c2_57, %c0_58] : memref<4x18x256xf32, #tpu.memory_space<vmem>>, vector<4x16x256xf32>
    %44 = vector.shape_cast %43 : vector<4x16x256xf32> to vector<64x256xf32>
    %c2_59 = arith.constant 2 : index
    %c0_60 = arith.constant 0 : index
    %c0_61 = arith.constant 0 : index
    %45 = vector.load %arg3[%c2_59, %c0_60, %c0_61] : memref<3x256x256xf32, #tpu.memory_space<vmem>>, vector<1x256x256xf32>
    %46 = vector.shape_cast %45 : vector<1x256x256xf32> to vector<256x256xf32>
    %cst_62 = arith.constant dense<0.000000e+00> : vector<64x256xf32>
    %47 = tpu.matmul %44, %46, %cst_62 {dimension_numbers = #tpu.dot_dimension_numbers<[1], [0], [0], [1], [0, 0, 1, 1], [], []>} : vector<64x256xf32>, vector<256x256xf32>, vector<64x256xf32> -> vector<64x256xf32>
    %48 = arith.addf %42, %47 : vector<64x256xf32>
    %c0_63 = arith.constant 0 : index
    %c0_64 = arith.constant 0 : index
    %c0_65 = arith.constant 0 : index
    %49 = vector.load %arg1[%c0_63, %c0_64, %c0_65] : memref<4x16x256xf32, #tpu.memory_space<vmem>>, vector<4x16x256xf32>
    %50 = vector.shape_cast %49 : vector<4x16x256xf32> to vector<64x256xf32>
    %c0_66 = arith.constant 0 : index
    %c0_67 = arith.constant 0 : index
    %51 = vector.load %arg5[%c0_66, %c0_67] : memref<1x256xf32, #tpu.memory_space<vmem>>, vector<1x256xf32>
    %52 = vector.broadcast %51 : vector<1x256xf32> to vector<64x256xf32>
    %53 = arith.addf %48, %52 : vector<64x256xf32>
    %54 = arith.addf %53, %50 : vector<64x256xf32>
    %cst_68 = arith.constant 0.000000e+00 : f32
    %55 = vector.broadcast %cst_68 : f32 to vector<64x256xf32>
    %56 = arith.maximumf %54, %55 : vector<64x256xf32>
    %57 = vector.shape_cast %56 : vector<64x256xf32> to vector<4x16x256xf32>
    %c0_69 = arith.constant 0 : index
    %c0_70 = arith.constant 0 : index
    %c0_71 = arith.constant 0 : index
    %58 = vector.load %arg6[%c0_69, %c0_70, %c0_71] : memref<4x16x256xf32, #tpu.memory_space<vmem>>, vector<4x16x256xf32>
    tpu.vector_store %arg6[%c0_69, %c0_70, %c0_71], %57 {strides = array<i32>} : memref<4x16x256xf32, #tpu.memory_space<vmem>>, vector<4x16x256xf32>,
    return
  }
  func.func @transform_0(%arg0: i32) -> (i32, i32, i32) {
    %c0_i32 = arith.constant 0 : i32
    %c0_i32_0 = arith.constant 0 : i32
    %c0_i32_1 = arith.constant 0 : i32
    return %arg0, %c0_i32, %c0_i32_0 : i32, i32, i32
  }
  func.func @transform_1(%arg0: i32) -> (i32, i32, i32) {
    %c0_i32 = arith.constant 0 : i32
    %c0_i32_0 = arith.constant 0 : i32
    %c0_i32_1 = arith.constant 0 : i32
    %c0_i32_2 = arith.constant 0 : i32
    return %c0_i32, %c0_i32_0, %c0_i32_1 : i32, i32, i32
  }
  func.func @transform_2(%arg0: i32) -> (i32, i32, i32) {
    %c0_i32 = arith.constant 0 : i32
    %c0_i32_0 = arith.constant 0 : i32
    %c0_i32_1 = arith.constant 0 : i32
    %c0_i32_2 = arith.constant 0 : i32
    return %c0_i32, %c0_i32_0, %c0_i32_1 : i32, i32, i32
  }
  func.func @transform_3(%arg0: i32) -> (i32, i32) {
    %c0_i32 = arith.constant 0 : i32
    %c0_i32_0 = arith.constant 0 : i32
    %c0_i32_1 = arith.constant 0 : i32
    return %c0_i32, %c0_i32_0 : i32, i32
  }
  func.func @transform_4(%arg0: i32) -> (i32, i32) {
    %c0_i32 = arith.constant 0 : i32
    %c0_i32_0 = arith.constant 0 : i32
    %c0_i32_1 = arith.constant 0 : i32
    return %c0_i32, %c0_i32_0 : i32, i32
  }
  func.func @transform_5(%arg0: i32) -> (i32, i32, i32) {
    %c0_i32 = arith.constant 0 : i32
    %c0_i32_0 = arith.constant 0 : i32
    %c0_i32_1 = arith.constant 0 : i32
    return %arg0, %c0_i32, %c0_i32_0 : i32, i32, i32
  }
}

</mosaic_0001>

<llo_original>
// kernel: tpu_custom_call.1
$region0: #{tpu_custom_call.1}
  #allocation0 [shape = 'u32[]', space=smem, size = 0x4, offset = 0x4, fixed_abs, tag = 'smem constant byte address 0x4 - core index']
  #allocation1 [shape = 'u32[72,128]{1,0:T(1,128)}', space=vmem, size = 0x9000, scoped, tag = 'internal scratch']
  #allocation2 [shape = 'f32[4,18,256]{2,1,0:T(8,128)}', space=vmem, size = 0x18000, scoped, tag = 'scratch operand']
  #allocation3 [shape = 'f32[4,18,256]{2,1,0:T(8,128)}', space=vmem, size = 0x18000, scoped, tag = 'scratch operand']
  %s0 = inlined_call_operand.hbm [shape: f32[8,16,256], index: 0, kind: input, shape index: {}]
  %s1 = inlined_call_operand.hbm [shape: f32[3,256,256], index: 1, kind: input, shape index: {}]
  %s2 = inlined_call_operand.hbm [shape: f32[3,256,256], index: 2, kind: input, shape index: {}]
  %s3 = inlined_call_operand.vmem [shape: f32[1,256], index: 3, kind: input, shape index: {}]
  %s4 = inlined_call_operand.hbm [shape: f32[1,256], index: 4, kind: input, shape index: {}]
  %s5 = inlined_call_operand.hbm [shape: f32[8,16,256], index: 5, kind: output, shape index: {}]
  %s6 = sld [smem:[#allocation0]]
  $region69: #{tpu_custom_call.1} parent=0
    _
  %s8 = ssub.s32 1, %s6
  %s9 = scalar_select 0, %s8, %s6
  $region1: #{tpu_custom_call.1} parent=0
    #allocation4 [shape = 'u8[131072]{0}', space=vmem, size = 0x20000, scoped, tag = 'input window, operand 0']
    #allocation5 [shape = 's32[2]{0}', space=sflag, size = 0x8, scoped, tag = 'scoped memory for tpu_custom_call.1']
    #allocation6 [shape = 's32[2]{0}', space=sflag, size = 0x8, scoped, tag = 'scoped memory for tpu_custom_call.1']
    #allocation7 [shape = 'u8[786432]{0}', space=vmem, size = 0xc0000, scoped, tag = 'input window, operand 1, single buffered']
    #allocation8 [shape = 's32[1]{0}', space=sflag, size = 0x4, scoped, tag = 'scoped memory for tpu_custom_call.1']
    #allocation9 [shape = 'u8[786432]{0}', space=vmem, size = 0xc0000, scoped, tag = 'input window, operand 2, single buffered']
    #allocation10 [shape = 'u8[1024]{0}', space=vmem, size = 0x400, scoped, tag = 'input window, operand 4, single buffered']
    #allocation11 [shape = 's32[1]{0}', space=sflag, size = 0x4, scoped, tag = 'scoped memory for tpu_custom_call.1']
    #allocation12 [shape = 'u8[131072]{0}', space=vmem, size = 0x20000, scoped, tag = 'output window, operand 0']
    %10 = vsyncpa [#allocation5], 0
    %s11 = scalar_lea.sflag [#allocation5], 1
    %12 = vsyncpa %s11, 0
    %13 = vsyncpa [#allocation8], 0
    %14 = vsyncpa [#allocation11], 0
    %15 = vsyncpa [#allocation6], 0
    %s16 = scalar_lea.sflag [#allocation6], 1
    %17 = vsyncpa %s16, 0
    loop: start=0, step=1, limit=4
    $region2: #{tpu_custom_call.1} parent=1 // loop_pre_header
      _
    $region3: #{tpu_custom_call.1} parent=1 // loop_header
      %s19 = sphi 0, %s23
      %p20 = scmp.ge.s32.totalorder %s19, 4
      %s29 = sphi 0, %s31
      %s32 = sphi 0, %s29
      %s33 = sphi 0, %s32
      %s49 = sphi 0, %s33
      %s53 = sphi 0, %s53
      %s55 = sphi 0, %s53
      %s56 = sphi 0, %s55
      %s70 = sphi 0, %s56
      %s74 = sphi 0, %s74
      %s76 = sphi 0, %s74
      %s77 = sphi 0, %s76
      %s91 = sphi 0, %s77
      %s95 = sphi 0, %s95
      %s97 = sphi 0, %s95
      %s98 = sphi 0, %s97
      %s112 = sphi 0, %s98
      %s116 = sphi 0, %s116
      %s118 = sphi 0, %s116
      %s119 = sphi 0, %s118
      %s133 = sphi 0, %s119
      %s139 = sphi 0, %s141
      %s142 = sphi 0, %s139
      %s143 = sphi 0, %s142
      %s159 = sphi 0, %s143
    $region4: #{tpu_custom_call.1} parent=1 // loop_header_branch
      %22 = sbr.rel (%p20) target = $region8
    $region5: #{tpu_custom_call.1} parent=1 // loop_body
      %s24 = ssub.s32 %s19, 1
      %s25 = ssub.s32 %s19, 2
      %s26 = sadd.s32 %s19, 1
      %s27 = ssub.s32 %s19, %s26
      %p28 = scmp.eq.s32.totalorder %s27, 0
      %s30 = sadd.s32 %s29, 1
      %s31 = scalar_select %p28, %s29, %s30
      %p34 = pneg %p28
      %p35 = scmp.eq.s32.totalorder %s19, 1
      %p36 = por %p34, %p35
      %p37 = scmp.ne.s32.totalorder %s29, %s32
      %p38 = scmp.eq.s32.totalorder %s19, 0
      %p39 = por %p37, %p38
      %p40 = scmp.ne.s32.totalorder %s29, %s32
      %p41 = scmp.eq.s32.totalorder %s24, 1
      %p42 = por %p40, %p41
      %p43 = scmp.ne.s32.totalorder %s32, %s33
      %p44 = scmp.eq.s32.totalorder %s24, 0
      %p45 = por %p43, %p44
      %p46 = scmp.ne.s32.totalorder %s32, %s33
      %p47 = scmp.eq.s32.totalorder %s25, 1
      %p48 = por %p46, %p47
      %p50 = scmp.ne.s32.totalorder %s33, %s49
      %p51 = scmp.eq.s32.totalorder %s25, 0
      %p52 = por %p50, %p51
      %s54 = sadd.s32 %s53, 1
      %p57 = scmp.eq.s32.totalorder %s19, 1
      %p58 = scmp.ne.s32.totalorder %s53, %s55
      %p59 = scmp.eq.s32.totalorder %s19, 0
      %p60 = por %p58, %p59
      %p61 = scmp.ne.s32.totalorder %s53, %s55
      %p62 = scmp.eq.s32.totalorder %s24, 1
      %p63 = por %p61, %p62
      %p64 = scmp.ne.s32.totalorder %s55, %s56
      %p65 = scmp.eq.s32.totalorder %s24, 0
      %p66 = por %p64, %p65
      %p67 = scmp.ne.s32.totalorder %s55, %s56
      %p68 = scmp.eq.s32.totalorder %s25, 1
      %p69 = por %p67, %p68
      %p71 = scmp.ne.s32.totalorder %s56, %s70
      %p72 = scmp.eq.s32.totalorder %s25, 0
      %p73 = por %p71, %p72
      %s75 = sadd.s32 %s74, 1
      %p78 = scmp.eq.s32.totalorder %s19, 1
      %p79 = scmp.ne.s32.totalorder %s74, %s76
      %p80 = scmp.eq.s32.totalorder %s19, 0
      %p81 = por %p79, %p80
      %p82 = scmp.ne.s32.totalorder %s74, %s76
      %p83 = scmp.eq.s32.totalorder %s24, 1
      %p84 = por %p82, %p83
      %p85 = scmp.ne.s32.totalorder %s76, %s77
      %p86 = scmp.eq.s32.totalorder %s24, 0
      %p87 = por %p85, %p86
      %p88 = scmp.ne.s32.totalorder %s76, %s77
      %p89 = scmp.eq.s32.totalorder %s25, 1
      %p90 = por %p88, %p89
      %p92 = scmp.ne.s32.totalorder %s77, %s91
      %p93 = scmp.eq.s32.totalorder %s25, 0
      %p94 = por %p92, %p93
      %s96 = sadd.s32 %s95, 1
      %p99 = scmp.eq.s32.totalorder %s19, 1
      %p100 = scmp.ne.s32.totalorder %s95, %s97
      %p101 = scmp.eq.s32.totalorder %s19, 0
      %p102 = por %p100, %p101
      %p103 = scmp.ne.s32.totalorder %s95, %s97
      %p104 = scmp.eq.s32.totalorder %s24, 1
      %p105 = por %p103, %p104
      %p106 = scmp.ne.s32.totalorder %s97, %s98
      %p107 = scmp.eq.s32.totalorder %s24, 0
      %p108 = por %p106, %p107
      %p109 = scmp.ne.s32.totalorder %s97, %s98
      %p110 = scmp.eq.s32.totalorder %s25, 1
      %p111 = por %p109, %p110
      %p113 = scmp.ne.s32.totalorder %s98, %s112
      %p114 = scmp.eq.s32.totalorder %s25, 0
      %p115 = por %p113, %p114
      %s117 = sadd.s32 %s116, 1
      %p120 = scmp.eq.s32.totalorder %s19, 1
      %p121 = scmp.ne.s32.totalorder %s116, %s118
      %p122 = scmp.eq.s32.totalorder %s19, 0
      %p123 = por %p121, %p122
      %p124 = scmp.ne.s32.totalorder %s116, %s118
      %p125 = scmp.eq.s32.totalorder %s24, 1
      %p126 = por %p124, %p125
      %p127 = scmp.ne.s32.totalorder %s118, %s119
      %p128 = scmp.eq.s32.totalorder %s24, 0
      %p129 = por %p127, %p128
      %p130 = scmp.ne.s32.totalorder %s118, %s119
      %p131 = scmp.eq.s32.totalorder %s25, 1
      %p132 = por %p130, %p131
      %p134 = scmp.ne.s32.totalorder %s119, %s133
      %p135 = scmp.eq.s32.totalorder %s25, 0
      %p136 = por %p134, %p135
      %s137 = ssub.s32 %s19, %s26
      %p138 = scmp.eq.s32.totalorder %s137, 0
      %s140 = sadd.s32 %s139, 1
      %s141 = scalar_select %p138, %s139, %s140
      %p144 = pneg %p138
      %p145 = scmp.eq.s32.totalorder %s19, 1
      %p146 = por %p144, %p145
      %p147 = scmp.ne.s32.totalorder %s139, %s142
      %p148 = scmp.eq.s32.totalorder %s19, 0
      %p149 = por %p147, %p148
      %p150 = scmp.ne.s32.totalorder %s139, %s142
      %p151 = scmp.eq.s32.totalorder %s24, 1
      %p152 = por %p150, %p151
      %p153 = scmp.ne.s32.totalorder %s142, %s143
      %p154 = scmp.eq.s32.totalorder %s24, 0
      %p155 = por %p153, %p154
      %p156 = scmp.ne.s32.totalorder %s142, %s143
      %p157 = scmp.eq.s32.totalorder %s25, 1
      %p158 = por %p156, %p157
      %p160 = scmp.ne.s32.totalorder %s143, %s159
      %p161 = scmp.eq.s32.totalorder %s25, 0
      %p162 = por %p160, %p161
      %p163 = scmp.le.s32.totalorder 1, %s19
      %p164 = scmp.lt.s32.totalorder %s19, 3
      %p165 = pnand %p163, %p164
      %p166 = pneg %p165
      // Predicated region
      $region9: #{tpu_custom_call.1} parent=5 // pred_check
        _
      $region10: #{tpu_custom_call.1} parent=5 // pred_check_branch
        %168 = sbr.rel (%p165) target = $region12
      $region11: #{tpu_custom_call.1} parent=5 // pred_region
        %s169 = ssub.s32 %s19, 1
        // Predicated region
        $region13: #{tpu_custom_call.1} parent=11 // pred_check
          %p170 = pneg %p66
        $region14: #{tpu_custom_call.1} parent=11 // pred_check_branch
          %172 = sbr.rel (%p170) target = $region16
        $region15: #{tpu_custom_call.1} parent=11 // pred_region
          %174 = vsyncadd [#allocation8], 0
          %s175 = sshll.u32 %s1, 4
          %s176 = int_to_ptr.hbm [resolvable:$true] %s175
          %s177 = sshll.u32 [#allocation7], 4
          %s178 = int_to_ptr.vmem [resolvable:$true] %s177
          %183 = dma.hbm_to_vmem [thread:$0]  %s176, 24576, %s178, [#allocation8], 256, 256, 16
        $region16: #{tpu_custom_call.1} parent=11 // pred_fallthru
          _
        // Predicated region
        $region17: #{tpu_custom_call.1} parent=11 // pred_check
          %p184 = pneg %p87
        $region18: #{tpu_custom_call.1} parent=11 // pred_check_branch
          %186 = sbr.rel (%p184) target = $region20
        $region19: #{tpu_custom_call.1} parent=11 // pred_region
          %188 = vsyncadd [#allocation8], 0
          %s189 = sshll.u32 %s2, 4
          %s190 = int_to_ptr.hbm [resolvable:$true] %s189
          %s191 = sshll.u32 [#allocation9], 4
          %s192 = int_to_ptr.vmem [resolvable:$true] %s191
          %197 = dma.hbm_to_vmem [thread:$0]  %s190, 24576, %s192, [#allocation8], 256, 256, 16
        $region20: #{tpu_custom_call.1} parent=11 // pred_fallthru
          _
        // Predicated region
        $region21: #{tpu_custom_call.1} parent=11 // pred_check
          %p198 = pneg %p108
        $region22: #{tpu_custom_call.1} parent=11 // pred_check_branch
          %200 = sbr.rel (%p198) target = $region24
        $region23: #{tpu_custom_call.1} parent=11 // pred_region
          _
        $region24: #{tpu_custom_call.1} parent=11 // pred_fallthru
          _
        // Predicated region
        $region25: #{tpu_custom_call.1} parent=11 // pred_check
          %p201 = pneg %p129
        $region26: #{tpu_custom_call.1} parent=11 // pred_check_branch
          %203 = sbr.rel (%p201) target = $region28
        $region27: #{tpu_custom_call.1} parent=11 // pred_region
          %205 = vsyncadd [#allocation11], 0
          %s207 = sshll.u32 %s4, 4
          %s208 = int_to_ptr.hbm [resolvable:$true] %s207
          %s209 = sshll.u32 [#allocation10], 4
          %s210 = int_to_ptr.vmem [resolvable:$true] %s209
          %212 = dma.hbm_to_vmem [thread:$0]  %s208, 32, %s210, [#allocation11]
        $region28: #{tpu_custom_call.1} parent=11 // pred_fallthru
          _
      $region12: #{tpu_custom_call.1} parent=5 // pred_fallthru
        _
      %p213 = scmp.lt.s32.totalorder %s19, 2
      // Predicated region
      $region29: #{tpu_custom_call.1} parent=5 // pred_check
        %p214 = pneg %p213
      $region30: #{tpu_custom_call.1} parent=5 // pred_check_branch
        %216 = sbr.rel (%p214) target = $region32
      $region31: #{tpu_custom_call.1} parent=5 // pred_region
        // Predicated region
        $region33: #{tpu_custom_call.1} parent=31 // pred_check
          %p217 = pneg %p39
        $region34: #{tpu_custom_call.1} parent=31 // pred_check_branch
          %219 = sbr.rel (%p217) target = $region36
        $region35: #{tpu_custom_call.1} parent=31 // pred_region
          %s220 = sand.u32 %s29, 1
          %s221 = scalar_lea.sflag [#allocation5], %s220
          %s222 = sand.u32 %s29, 1
          %s223 = smul.addr %s222, 128
          %s224 = scalar_lea.vmem [#allocation4], %s223
          %s225 = smul.u32 4, %s19
          %227 = vsyncadd %s221, 0
          %s228 = smul.addr %s225, 4
          %s229 = smul.addr %s228, 8
          %s230 = scalar_lea.hbm %s0, %s229
          %s231 = sshll.u32 %s230, 4
          %s232 = int_to_ptr.hbm [resolvable:$true] %s231
          %s233 = sshll.u32 %s224, 4
          %s234 = int_to_ptr.vmem [resolvable:$true] %s233
          %239 = dma.hbm_to_vmem [thread:$0]  %s232, 2048, %s234, %s221, 256, 256, 16
        $region36: #{tpu_custom_call.1} parent=31 // pred_fallthru
          _
      $region32: #{tpu_custom_call.1} parent=5 // pred_fallthru
        _
      %p240 = scmp.le.s32.totalorder 1, %s19
      %p241 = scmp.lt.s32.totalorder %s19, 3
      %p242 = pnand %p240, %p241
      %p243 = pneg %p242
      // Predicated region
      $region37: #{tpu_custom_call.1} parent=5 // pred_check
        _
      $region38: #{tpu_custom_call.1} parent=5 // pred_check_branch
        %245 = sbr.rel (%p242) target = $region40
      $region39: #{tpu_custom_call.1} parent=5 // pred_region
        %s246 = ssub.s32 %s19, 1
        %s247 = sand.u32 %s32, 1
        %s248 = scalar_lea.sflag [#allocation5], %s247
        %s249 = sand.u32 %s32, 1
        %s250 = smul.addr %s249, 128
        %s251 = scalar_lea.vmem [#allocation4], %s250
        // Predicated region
        $region41: #{tpu_custom_call.1} parent=39 // pred_check
          %p252 = pneg %p45
        $region42: #{tpu_custom_call.1} parent=39 // pred_check_branch
          %254 = sbr.rel (%p252) target = $region44
        $region43: #{tpu_custom_call.1} parent=39 // pred_region
          %256 = dma.done %s248, 2048
        $region44: #{tpu_custom_call.1} parent=39 // pred_fallthru
          _
        // Predicated region
        $region45: #{tpu_custom_call.1} parent=39 // pred_check
          %p257 = pneg %p66
        $region46: #{tpu_custom_call.1} parent=39 // pred_check_branch
          %259 = sbr.rel (%p257) target = $region48
        $region47: #{tpu_custom_call.1} parent=39 // pred_region
          %261 = dma.done [#allocation8], 24576
        $region48: #{tpu_custom_call.1} parent=39 // pred_fallthru
          _
        // Predicated region
        $region49: #{tpu_custom_call.1} parent=39 // pred_check
          %p262 = pneg %p87
        $region50: #{tpu_custom_call.1} parent=39 // pred_check_branch
          %264 = sbr.rel (%p262) target = $region52
        $region51: #{tpu_custom_call.1} parent=39 // pred_region
          %266 = dma.done [#allocation8], 24576
        $region52: #{tpu_custom_call.1} parent=39 // pred_fallthru
          _
        // Predicated region
        $region53: #{tpu_custom_call.1} parent=39 // pred_check
          %p267 = pneg %p129
        $region54: #{tpu_custom_call.1} parent=39 // pred_check_branch
          %269 = sbr.rel (%p267) target = $region56
        $region55: #{tpu_custom_call.1} parent=39 // pred_region
          %271 = dma.done [#allocation11], 32
        $region56: #{tpu_custom_call.1} parent=39 // pred_fallthru
          _
        %s272 = sand.u32 %s32, 1
        %s273 = scalar_lea.sflag [#allocation5], %s272
        %s274 = sand.u32 %s32, 1
        %s275 = smul.addr %s274, 128
        %s276 = scalar_lea.vmem [#allocation4], %s275
        %p277 = pneg %p45
        %p278 = pneg %p42
        %p279 = pneg %p66
        %p280 = pneg %p63
        %p281 = pneg %p87
        %p282 = pneg %p84
        %p283 = pneg %p108
        %p284 = pneg %p105
        %p285 = pneg %p129
        %p286 = pneg %p126
        %p287 = pneg %p155
        %p288 = pneg %p152
        %s289 = sand.u32 %s142, 1
        %s290 = scalar_lea.sflag [#allocation6], %s289
        %s291 = sand.u32 %s142, 1
        %s292 = smul.addr %s291, 128
        %s293 = scalar_lea.vmem [#allocation12], %s292
        %s294 = smul.u32 4, %s24
        %s295 = smul.u32 4, %s24
        %v296 = vlaneseq
        %vm297 = vcmp.ge.s32.totalorder %v296, 0
        %vm298 = vcmp.lt.s32.totalorder %v296, 256
        %vm299 = vmand %vm297, %vm298
        %300 = vst.msk [vmem:[#allocation2] ss:$8 sm:$0x3] %vm299, 0.0
        %301 = vst.msk [vmem:[#allocation2] ss:$8 sm:$0x0] %vm299, 0.0
        %s302 = scalar_lea.vmem [#allocation2], 48
        %303 = vst.msk [vmem:[%s302] ss:$8 sm:$0x3] %vm299, 0.0
        %304 = vst.msk [vmem:[%s302] ss:$8 sm:$0x0] %vm299, 0.0
        %s305 = scalar_lea.vmem [#allocation2], 96
        %306 = vst.msk [vmem:[%s305] ss:$8 sm:$0x3] %vm299, 0.0
        %307 = vst.msk [vmem:[%s305] ss:$8 sm:$0x0] %vm299, 0.0
        %s308 = scalar_lea.vmem [#allocation2], 144
        %309 = vst.msk [vmem:[%s308] ss:$8 sm:$0x3] %vm299, 0.0
        %310 = vst.msk [vmem:[%s308] ss:$8 sm:$0x0] %vm299, 0.0
        %s311 = scalar_lea.vmem [#allocation2], 33
        %312 = vst.msk [vmem:[%s311] ss:$8 sm:$0x3] %vm299, 0.0
        %313 = vst.msk [vmem:[%s311] ss:$8 sm:$0x0] %vm299, 0.0
        %s314 = scalar_lea.vmem [#allocation2], 81
        %315 = vst.msk [vmem:[%s314] ss:$8 sm:$0x3] %vm299, 0.0
        %316 = vst.msk [vmem:[%s314] ss:$8 sm:$0x0] %vm299, 0.0
        %s317 = scalar_lea.vmem [#allocation2], 129
        %318 = vst.msk [vmem:[%s317] ss:$8 sm:$0x3] %vm299, 0.0
        %319 = vst.msk [vmem:[%s317] ss:$8 sm:$0x0] %vm299, 0.0
        %s320 = scalar_lea.vmem [#allocation2], 177
        %321 = vst.msk [vmem:[%s320] ss:$8 sm:$0x3] %vm299, 0.0
        %322 = vst.msk [vmem:[%s320] ss:$8 sm:$0x0] %vm299, 0.0
        %v323 = vld [vmem:[%s251] sm:$0xff]
        %v324 = vld [vmem:[%s251 + $0x8] sm:$0xff]
        %v325 = vld [vmem:[%s251 + $0x10] sm:$0xff]
        %v326 = vld [vmem:[%s251 + $0x18] sm:$0xff]
        %v327 = vld [vmem:[%s251 + $0x20] sm:$0xff]
        %v328 = vld [vmem:[%s251 + $0x28] sm:$0xff]
        %v329 = vld [vmem:[%s251 + $0x30] sm:$0xff]
        %v330 = vld [vmem:[%s251 + $0x38] sm:$0xff]
        %v331 = vld [vmem:[%s251 + $0x40] sm:$0xff]
        %v332 = vld [vmem:[%s251 + $0x48] sm:$0xff]
        %v333 = vld [vmem:[%s251 + $0x50] sm:$0xff]
        %v334 = vld [vmem:[%s251 + $0x58] sm:$0xff]
        %v335 = vld [vmem:[%s251 + $0x60] sm:$0xff]
        %v336 = vld [vmem:[%s251 + $0x68] sm:$0xff]
        %v337 = vld [vmem:[%s251 + $0x70] sm:$0xff]
        %v338 = vld [vmem:[%s251 + $0x78] sm:$0xff]
        %vm355 = vcmask 1040384
        %v356 = vrot.slane %v323, 7
        %v357 = vrot.slane %v324, 7
        %v358 = vrot.slane %v325, 7
        %v359 = vsel %vm355, %v356, %v358
        %v360 = vrot.slane %v326, 7
        %v361 = vsel %vm355, %v357, %v360
        %v362 = vrot.slane %v327, 7
        %v363 = vrot.slane %v328, 7
        %v364 = vrot.slane %v329, 7
        %v365 = vsel %vm355, %v362, %v364
        %v366 = vrot.slane %v330, 7
        %v367 = vsel %vm355, %v363, %v366
        %v368 = vrot.slane %v331, 7
        %v369 = vrot.slane %v332, 7
        %v370 = vrot.slane %v333, 7
        %v371 = vsel %vm355, %v368, %v370
        %v372 = vrot.slane %v334, 7
        %v373 = vsel %vm355, %v369, %v372
        %v374 = vrot.slane %v335, 7
        %v375 = vrot.slane %v336, 7
        %v376 = vrot.slane %v337, 7
        %v377 = vsel %vm355, %v374, %v376
        %v378 = vrot.slane %v338, 7
        %v379 = vsel %vm355, %v375, %v378
        %404 = vst [vmem:[#allocation2] sm:$0xfe] %v356
        %405 = vst [vmem:[#allocation2 + $0x8] sm:$0xfe] %v357
        %406 = vst [vmem:[#allocation2 + $0x10] sm:$0xff] %v359
        %407 = vst [vmem:[#allocation2 + $0x18] sm:$0xff] %v361
        %408 = vst [vmem:[#allocation2 + $0x20] sm:$0x1] %v358
        %409 = vst [vmem:[#allocation2 + $0x28] sm:$0x1] %v360
        %410 = vst [vmem:[#allocation2 + $0x30] sm:$0xfe] %v362
        %411 = vst [vmem:[#allocation2 + $0x38] sm:$0xfe] %v363
        %412 = vst [vmem:[#allocation2 + $0x40] sm:$0xff] %v365
        %413 = vst [vmem:[#allocation2 + $0x48] sm:$0xff] %v367
        %414 = vst [vmem:[#allocation2 + $0x50] sm:$0x1] %v364
        %415 = vst [vmem:[#allocation2 + $0x58] sm:$0x1] %v366
        %416 = vst [vmem:[#allocation2 + $0x60] sm:$0xfe] %v368
        %417 = vst [vmem:[#allocation2 + $0x68] sm:$0xfe] %v369
        %418 = vst [vmem:[#allocation2 + $0x70] sm:$0xff] %v371
        %419 = vst [vmem:[#allocation2 + $0x78] sm:$0xff] %v373
        %420 = vst [vmem:[#allocation2 + $0x80] sm:$0x1] %v370
        %421 = vst [vmem:[#allocation2 + $0x88] sm:$0x1] %v372
        %422 = vst [vmem:[#allocation2 + $0x90] sm:$0xfe] %v374
        %423 = vst [vmem:[#allocation2 + $0x98] sm:$0xfe] %v375
        %424 = vst [vmem:[#allocation2 + $0xa0] sm:$0xff] %v377
        %425 = vst [vmem:[#allocation2 + $0xa8] sm:$0xff] %v379
        %426 = vst [vmem:[#allocation2 + $0xb0] sm:$0x1] %v376
        %427 = vst [vmem:[#allocation2 + $0xb8] sm:$0x1] %v378
        %v428 = vld [vmem:[#allocation2] sm:$0xff]
        %v429 = vld [vmem:[#allocation2 + $0x8] sm:$0xff]
        %v430 = vld [vmem:[#allocation2 + $0x10] sm:$0xff]
        %v431 = vld [vmem:[#allocation2 + $0x18] sm:$0xff]
        %v432 = vld [vmem:[#allocation2 + $0x30] sm:$0xff]
        %v433 = vld [vmem:[#allocation2 + $0x38] sm:$0xff]
        %v434 = vld [vmem:[#allocation2 + $0x40] sm:$0xff]
        %v435 = vld [vmem:[#allocation2 + $0x48] sm:$0xff]
        %v436 = vld [vmem:[#allocation2 + $0x60] sm:$0xff]
        %v437 = vld [vmem:[#allocation2 + $0x68] sm:$0xff]
        %v438 = vld [vmem:[#allocation2 + $0x70] sm:$0xff]
        %v439 = vld [vmem:[#allocation2 + $0x78] sm:$0xff]
        %v440 = vld [vmem:[#allocation2 + $0x90] sm:$0xff]
        %v441 = vld [vmem:[#allocation2 + $0x98] sm:$0xff]
        %v442 = vld [vmem:[#allocation2 + $0xa0] sm:$0xff]
        %v443 = vld [vmem:[#allocation2 + $0xa8] sm:$0xff]
        %v444 = vld [vmem:[#allocation7] sm:$0xff]
        %v445 = vld [vmem:[#allocation7 + $0x8] sm:$0xff]
        %v446 = vld [vmem:[#allocation7 + $0x10] sm:$0xff]
        %v447 = vld [vmem:[#allocation7 + $0x18] sm:$0xff]
        %v448 = vld [vmem:[#allocation7 + $0x20] sm:$0xff]
        %v449 = vld [vmem:[#allocation7 + $0x28] sm:$0xff]
        %v450 = vld [vmem:[#allocation7 + $0x30] sm:$0xff]
        %v451 = vld [vmem:[#allocation7 + $0x38] sm:$0xff]
        %v452 = vld [vmem:[#allocation7 + $0x40] sm:$0xff]
        %v453 = vld [vmem:[#allocation7 + $0x48] sm:$0xff]
        %v454 = vld [vmem:[#allocation7 + $0x50] sm:$0xff]
        %v455 = vld [vmem:[#allocation7 + $0x58] sm:$0xff]
        %v456 = vld [vmem:[#allocation7 + $0x60] sm:$0xff]
        %v457 = vld [vmem:[#allocation7 + $0x68] sm:$0xff]
        %v458 = vld [vmem:[#allocation7 + $0x70] sm:$0xff]
        %v459 = vld [vmem:[#allocation7 + $0x78] sm:$0xff]
        %v460 = vld [vmem:[#allocation7 + $0x80] sm:$0xff]
        %v461 = vld [vmem:[#allocation7 + $0x88] sm:$0xff]
        %v462 = vld [vmem:[#allocation7 + $0x90] sm:$0xff]
        %v463 = vld [vmem:[#allocation7 + $0x98] sm:$0xff]
        %v464 = vld [vmem:[#allocation7 + $0xa0] sm:$0xff]
        %v465 = vld [vmem:[#allocation7 + $0xa8] sm:$0xff]
        %v466 = vld [vmem:[#allocation7 + $0xb0] sm:$0xff]
        %v467 = vld [vmem:[#allocation7 + $0xb8] sm:$0xff]
        %v468 = vld [vmem:[#allocation7 + $0xc0] sm:$0xff]
        %v469 = vld [vmem:[#allocation7 + $0xc8] sm:$0xff]
        %v470 = vld [vmem:[#allocation7 + $0xd0] sm:$0xff]
        %v471 = vld [vmem:[#allocation7 + $0xd8] sm:$0xff]
        %v472 = vld [vmem:[#allocation7 + $0xe0] sm:$0xff]
        %v473 = vld [vmem:[#allocation7 + $0xe8] sm:$0xff]
        %v474 = vld [vmem:[#allocation7 + $0xf0] sm:$0xff]
        %v475 = vld [vmem:[#allocation7 + $0xf8] sm:$0xff]
        %v476 = vld [vmem:[#allocation7 + $0x100] sm:$0xff]
        %v477 = vld [vmem:[#allocation7 + $0x108] sm:$0xff]
        %v478 = vld [vmem:[#allocation7 + $0x110] sm:$0xff]
        %v479 = vld [vmem:[#allocation7 + $0x118] sm:$0xff]
        %v480 = vld [vmem:[#allocation7 + $0x120] sm:$0xff]
        %v481 = vld [vmem:[#allocation7 + $0x128] sm:$0xff]
        %v482 = vld [vmem:[#allocation7 + $0x130] sm:$0xff]
        %v483 = vld [vmem:[#allocation7 + $0x138] sm:$0xff]
        %v484 = vld [vmem:[#allocation7 + $0x140] sm:$0xff]
        %v485 = vld [vmem:[#allocation7 + $0x148] sm:$0xff]
        %v486 = vld [vmem:[#allocation7 + $0x150] sm:$0xff]
        %v487 = vld [vmem:[#allocation7 + $0x158] sm:$0xff]
        %v488 = vld [vmem:[#allocation7 + $0x160] sm:$0xff]
        %v489 = vld [vmem:[#allocation7 + $0x168] sm:$0xff]
        %v490 = vld [vmem:[#allocation7 + $0x170] sm:$0xff]
        %v491 = vld [vmem:[#allocation7 + $0x178] sm:$0xff]
        %v492 = vld [vmem:[#allocation7 + $0x180] sm:$0xff]
        %v493 = vld [vmem:[#allocation7 + $0x188] sm:$0xff]
        %v494 = vld [vmem:[#allocation7 + $0x190] sm:$0xff]
        %v495 = vld [vmem:[#allocation7 + $0x198] sm:$0xff]
        %v496 = vld [vmem:[#allocation7 + $0x1a0] sm:$0xff]
        %v497 = vld [vmem:[#allocation7 + $0x1a8] sm:$0xff]
        %v498 = vld [vmem:[#allocation7 + $0x1b0] sm:$0xff]
        %v499 = vld [vmem:[#allocation7 + $0x1b8] sm:$0xff]
        %v500 = vld [vmem:[#allocation7 + $0x1c0] sm:$0xff]
        %v501 = vld [vmem:[#allocation7 + $0x1c8] sm:$0xff]
        %v502 = vld [vmem:[#allocation7 + $0x1d0] sm:$0xff]
        %v503 = vld [vmem:[#allocation7 + $0x1d8] sm:$0xff]
        %v504 = vld [vmem:[#allocation7 + $0x1e0] sm:$0xff]
        %v505 = vld [vmem:[#allocation7 + $0x1e8] sm:$0xff]
        %v506 = vld [vmem:[#allocation7 + $0x1f0] sm:$0xff]
        %v507 = vld [vmem:[#allocation7 + $0x1f8] sm:$0xff]
        %v508 = vld [vmem:[#allocation2] sm:$0xfe]
        %v509 = vld [vmem:[#allocation2 + $0x8] sm:$0xfe]
        %v510 = vld [vmem:[#allocation2 + $0x20] sm:$0x1]
        %v511 = vld [vmem:[#allocation2 + $0x28] sm:$0x1]
        %v512 = vld [vmem:[#allocation2 + $0x30] sm:$0xfe]
        %v513 = vld [vmem:[#allocation2 + $0x38] sm:$0xfe]
        %v514 = vld [vmem:[#allocation2 + $0x50] sm:$0x1]
        %v515 = vld [vmem:[#allocation2 + $0x58] sm:$0x1]
        %v516 = vld [vmem:[#allocation2 + $0x60] sm:$0xfe]
        %v517 = vld [vmem:[#allocation2 + $0x68] sm:$0xfe]
        %v518 = vld [vmem:[#allocation2 + $0x80] sm:$0x1]
        %v519 = vld [vmem:[#allocation2 + $0x88] sm:$0x1]
        %v520 = vld [vmem:[#allocation2 + $0x90] sm:$0xfe]
        %v521 = vld [vmem:[#allocation2 + $0x98] sm:$0xfe]
        %v522 = vld [vmem:[#allocation2 + $0xb0] sm:$0x1]
        %v523 = vld [vmem:[#allocation2 + $0xb8] sm:$0x1]
        %vm548 = vcmask 1046528
        %v549 = vrot.slane %v508, 1
        %v550 = vrot.slane %v430, 1
        %v551 = vsel %vm548, %v549, %v550
        %v552 = vrot.slane %v509, 1
        %v553 = vrot.slane %v431, 1
        %v554 = vsel %vm548, %v552, %v553
        %v555 = vrot.slane %v510, 1
        %v556 = vsel %vm548, %v550, %v555
        %v557 = vrot.slane %v511, 1
        %v558 = vsel %vm548, %v553, %v557
        %v559 = vrot.slane %v512, 1
        %v560 = vrot.slane %v434, 1
        %v561 = vsel %vm548, %v559, %v560
        %v562 = vrot.slane %v513, 1
        %v563 = vrot.slane %v435, 1
        %v564 = vsel %vm548, %v562, %v563
        %v565 = vrot.slane %v514, 1
        %v566 = vsel %vm548, %v560, %v565
        %v567 = vrot.slane %v515, 1
        %v568 = vsel %vm548, %v563, %v567
        %v569 = vrot.slane %v516, 1
        %v570 = vrot.slane %v438, 1
        %v571 = vsel %vm548, %v569, %v570
        %v572 = vrot.slane %v517, 1
        %v573 = vrot.slane %v439, 1
        %v574 = vsel %vm548, %v572, %v573
        %v575 = vrot.slane %v518, 1
        %v576 = vsel %vm548, %v570, %v575
        %v577 = vrot.slane %v519, 1
        %v578 = vsel %vm548, %v573, %v577
        %v579 = vrot.slane %v520, 1
        %v580 = vrot.slane %v442, 1
        %v581 = vsel %vm548, %v579, %v580
        %v582 = vrot.slane %v521, 1
        %v583 = vrot.slane %v443, 1
        %v584 = vsel %vm548, %v582, %v583
        %v585 = vrot.slane %v522, 1
        %v586 = vsel %vm548, %v580, %v585
        %v587 = vrot.slane %v523, 1
        %v588 = vsel %vm548, %v583, %v587
        %s605 = scalar_lea.vmem [#allocation7], 512
        %v606 = vld [vmem:[%s605] sm:$0xff]
        %v607 = vld [vmem:[%s605 + $0x8] sm:$0xff]
        %v608 = vld [vmem:[%s605 + $0x10] sm:$0xff]
        %v609 = vld [vmem:[%s605 + $0x18] sm:$0xff]
        %v610 = vld [vmem:[%s605 + $0x20] sm:$0xff]
        %v611 = vld [vmem:[%s605 + $0x28] sm:$0xff]
        %v612 = vld [vmem:[%s605 + $0x30] sm:$0xff]
        %v613 = vld [vmem:[%s605 + $0x38] sm:$0xff]
        %v614 = vld [vmem:[%s605 + $0x40] sm:$0xff]
        %v615 = vld [vmem:[%s605 + $0x48] sm:$0xff]
        %v616 = vld [vmem:[%s605 + $0x50] sm:$0xff]
        %v617 = vld [vmem:[%s605 + $0x58] sm:$0xff]
        %v618 = vld [vmem:[%s605 + $0x60] sm:$0xff]
        %v619 = vld [vmem:[%s605 + $0x68] sm:$0xff]
        %v620 = vld [vmem:[%s605 + $0x70] sm:$0xff]
        %v621 = vld [vmem:[%s605 + $0x78] sm:$0xff]
        %v622 = vld [vmem:[%s605 + $0x80] sm:$0xff]
        %v623 = vld [vmem:[%s605 + $0x88] sm:$0xff]
        %v624 = vld [vmem:[%s605 + $0x90] sm:$0xff]
        %v625 = vld [vmem:[%s605 + $0x98] sm:$0xff]
        %v626 = vld [vmem:[%s605 + $0xa0] sm:$0xff]
        %v627 = vld [vmem:[%s605 + $0xa8] sm:$0xff]
        %v628 = vld [vmem:[%s605 + $0xb0] sm:$0xff]
        %v629 = vld [vmem:[%s605 + $0xb8] sm:$0xff]
        %v630 = vld [vmem:[%s605 + $0xc0] sm:$0xff]
        %v631 = vld [vmem:[%s605 + $0xc8] sm:$0xff]
        %v632 = vld [vmem:[%s605 + $0xd0] sm:$0xff]
        %v633 = vld [vmem:[%s605 + $0xd8] sm:$0xff]
        %v634 = vld [vmem:[%s605 + $0xe0] sm:$0xff]
        %v635 = vld [vmem:[%s605 + $0xe8] sm:$0xff]
        %v636 = vld [vmem:[%s605 + $0xf0] sm:$0xff]
        %v637 = vld [vmem:[%s605 + $0xf8] sm:$0xff]
        %v638 = vld [vmem:[%s605 + $0x100] sm:$0xff]
        %v639 = vld [vmem:[%s605 + $0x108] sm:$0xff]
        %v640 = vld [vmem:[%s605 + $0x110] sm:$0xff]
        %v641 = vld [vmem:[%s605 + $0x118] sm:$0xff]
        %v642 = vld [vmem:[%s605 + $0x120] sm:$0xff]
        %v643 = vld [vmem:[%s605 + $0x128] sm:$0xff]
        %v644 = vld [vmem:[%s605 + $0x130] sm:$0xff]
        %v645 = vld [vmem:[%s605 + $0x138] sm:$0xff]
        %v646 = vld [vmem:[%s605 + $0x140] sm:$0xff]
        %v647 = vld [vmem:[%s605 + $0x148] sm:$0xff]
        %v648 = vld [vmem:[%s605 + $0x150] sm:$0xff]
        %v649 = vld [vmem:[%s605 + $0x158] sm:$0xff]
        %v650 = vld [vmem:[%s605 + $0x160] sm:$0xff]
        %v651 = vld [vmem:[%s605 + $0x168] sm:$0xff]
        %v652 = vld [vmem:[%s605 + $0x170] sm:$0xff]
        %v653 = vld [vmem:[%s605 + $0x178] sm:$0xff]
        %v654 = vld [vmem:[%s605 + $0x180] sm:$0xff]
        %v655 = vld [vmem:[%s605 + $0x188] sm:$0xff]
        %v656 = vld [vmem:[%s605 + $0x190] sm:$0xff]
        %v657 = vld [vmem:[%s605 + $0x198] sm:$0xff]
        %v658 = vld [vmem:[%s605 + $0x1a0] sm:$0xff]
        %v659 = vld [vmem:[%s605 + $0x1a8] sm:$0xff]
        %v660 = vld [vmem:[%s605 + $0x1b0] sm:$0xff]
        %v661 = vld [vmem:[%s605 + $0x1b8] sm:$0xff]
        %v662 = vld [vmem:[%s605 + $0x1c0] sm:$0xff]
        %v663 = vld [vmem:[%s605 + $0x1c8] sm:$0xff]
        %v664 = vld [vmem:[%s605 + $0x1d0] sm:$0xff]
        %v665 = vld [vmem:[%s605 + $0x1d8] sm:$0xff]
        %v666 = vld [vmem:[%s605 + $0x1e0] sm:$0xff]
        %v667 = vld [vmem:[%s605 + $0x1e8] sm:$0xff]
        %v668 = vld [vmem:[%s605 + $0x1f0] sm:$0xff]
        %v669 = vld [vmem:[%s605 + $0x1f8] sm:$0xff]
        %670 = vmatpush.msra.mxu0 %v636
        %671 = vmatpush.msra.mxu0 %v634
        %672 = vmatpush.msra.mxu0 %v632
        %673 = vmatpush.msra.mxu0 %v630
        %674 = vmatpush.msra.mxu0 %v628
        %675 = vmatpush.msra.mxu0 %v626
        %676 = vmatpush.msra.mxu0 %v624
        %677 = vmatpush.msra.mxu0 %v622
        %678 = vmatpush.msra.mxu0 %v620
        %679 = vmatpush.msra.mxu0 %v618
        %680 = vmatpush.msra.mxu0 %v616
        %681 = vmatpush.msra.mxu0 %v614
        %682 = vmatpush.msra.mxu0 %v612
        %683 = vmatpush.msra.mxu0 %v610
        %684 = vmatpush.msra.mxu0 %v608
        %685 = vmatpush.msra.mxu0 %v606
        %686 = vmatmul.f32.gmra.mxu0 %v551
        %v687 = vpop.f32.mrf.mxu0
        %v688 = vadd.f32 0.0, %v687
        %689 = vmatmul.f32.gmra.mxu0 %v556
        %v690 = vpop.f32.mrf.mxu0
        %v691 = vadd.f32 0.0, %v690
        %692 = vmatmul.f32.gmra.mxu0 %v561
        %v693 = vpop.f32.mrf.mxu0
        %v694 = vadd.f32 0.0, %v693
        %695 = vmatmul.f32.gmra.mxu0 %v566
        %v696 = vpop.f32.mrf.mxu0
        %v697 = vadd.f32 0.0, %v696
        %698 = vmatmul.f32.gmra.mxu0 %v571
        %v699 = vpop.f32.mrf.mxu0
        %v700 = vadd.f32 0.0, %v699
        %701 = vmatmul.f32.gmra.mxu0 %v576
        %v702 = vpop.f32.mrf.mxu0
        %v703 = vadd.f32 0.0, %v702
        %704 = vmatmul.f32.gmra.mxu0 %v581
        %v705 = vpop.f32.mrf.mxu0
        %v706 = vadd.f32 0.0, %v705
        %707 = vmatmul.f32.gmra.mxu0 %v586
        %v708 = vpop.f32.mrf.mxu0
        %v709 = vadd.f32 0.0, %v708
        %710 = vdwg.mxu0
        %711 = vmatpush.msra.mxu0 %v668
        %712 = vmatpush.msra.mxu0 %v666
        %713 = vmatpush.msra.mxu0 %v664
        %714 = vmatpush.msra.mxu0 %v662
        %715 = vmatpush.msra.mxu0 %v660
        %716 = vmatpush.msra.mxu0 %v658
        %717 = vmatpush.msra.mxu0 %v656
        %718 = vmatpush.msra.mxu0 %v654
        %719 = vmatpush.msra.mxu0 %v652
        %720 = vmatpush.msra.mxu0 %v650
        %721 = vmatpush.msra.mxu0 %v648
        %722 = vmatpush.msra.mxu0 %v646
        %723 = vmatpush.msra.mxu0 %v644
        %724 = vmatpush.msra.mxu0 %v642
        %725 = vmatpush.msra.mxu0 %v640
        %726 = vmatpush.msra.mxu0 %v638
        %727 = vmatmul.f32.gmra.mxu0 %v554
        %v728 = vpop.f32.mrf.mxu0
        %v729 = vadd.f32 %v688, %v728
        %730 = vmatmul.f32.gmra.mxu0 %v558
        %v731 = vpop.f32.mrf.mxu0
        %v732 = vadd.f32 %v691, %v731
        %733 = vmatmul.f32.gmra.mxu0 %v564
        %v734 = vpop.f32.mrf.mxu0
        %v735 = vadd.f32 %v694, %v734
        %736 = vmatmul.f32.gmra.mxu0 %v568
        %v737 = vpop.f32.mrf.mxu0
        %v738 = vadd.f32 %v697, %v737
        %739 = vmatmul.f32.gmra.mxu0 %v574
        %v740 = vpop.f32.mrf.mxu0
        %v741 = vadd.f32 %v700, %v740
        %742 = vmatmul.f32.gmra.mxu0 %v578
        %v743 = vpop.f32.mrf.mxu0
        %v744 = vadd.f32 %v703, %v743
        %745 = vmatmul.f32.gmra.mxu0 %v584
        %v746 = vpop.f32.mrf.mxu0
        %v747 = vadd.f32 %v706, %v746
        %748 = vmatmul.f32.gmra.mxu0 %v588
        %v749 = vpop.f32.mrf.mxu0
        %v750 = vadd.f32 %v709, %v749
        %751 = vdwg.mxu0
        %752 = vmatpush.msra.mxu0 %v637
        %753 = vmatpush.msra.mxu0 %v635
        %754 = vmatpush.msra.mxu0 %v633
        %755 = vmatpush.msra.mxu0 %v631
        %756 = vmatpush.msra.mxu0 %v629
        %757 = vmatpush.msra.mxu0 %v627
        %758 = vmatpush.msra.mxu0 %v625
        %759 = vmatpush.msra.mxu0 %v623
        %760 = vmatpush.msra.mxu0 %v621
        %761 = vmatpush.msra.mxu0 %v619
        %762 = vmatpush.msra.mxu0 %v617
        %763 = vmatpush.msra.mxu0 %v615
        %764 = vmatpush.msra.mxu0 %v613
        %765 = vmatpush.msra.mxu0 %v611
        %766 = vmatpush.msra.mxu0 %v609
        %767 = vmatpush.msra.mxu0 %v607
        %768 = vmatmul.f32.gmra.mxu0 %v551
        %v769 = vpop.f32.mrf.mxu0
        %v770 = vadd.f32 0.0, %v769
        %771 = vmatmul.f32.gmra.mxu0 %v556
        %v772 = vpop.f32.mrf.mxu0
        %v773 = vadd.f32 0.0, %v772
        %774 = vmatmul.f32.gmra.mxu0 %v561
        %v775 = vpop.f32.mrf.mxu0
        %v776 = vadd.f32 0.0, %v775
        %777 = vmatmul.f32.gmra.mxu0 %v566
        %v778 = vpop.f32.mrf.mxu0
        %v779 = vadd.f32 0.0, %v778
        %780 = vmatmul.f32.gmra.mxu0 %v571
        %v781 = vpop.f32.mrf.mxu0
        %v782 = vadd.f32 0.0, %v781
        %783 = vmatmul.f32.gmra.mxu0 %v576
        %v784 = vpop.f32.mrf.mxu0
        %v785 = vadd.f32 0.0, %v784
        %786 = vmatmul.f32.gmra.mxu0 %v581
        %v787 = vpop.f32.mrf.mxu0
        %v788 = vadd.f32 0.0, %v787
        %789 = vmatmul.f32.gmra.mxu0 %v586
        %v790 = vpop.f32.mrf.mxu0
        %v791 = vadd.f32 0.0, %v790
        %792 = vdwg.mxu0
        %793 = vmatpush.msra.mxu0 %v669
        %794 = vmatpush.msra.mxu0 %v667
        %795 = vmatpush.msra.mxu0 %v665
        %796 = vmatpush.msra.mxu0 %v663
        %797 = vmatpush.msra.mxu0 %v661
        %798 = vmatpush.msra.mxu0 %v659
        %799 = vmatpush.msra.mxu0 %v657
        %800 = vmatpush.msra.mxu0 %v655
        %801 = vmatpush.msra.mxu0 %v653
        %802 = vmatpush.msra.mxu0 %v651
        %803 = vmatpush.msra.mxu0 %v649
        %804 = vmatpush.msra.mxu0 %v647
        %805 = vmatpush.msra.mxu0 %v645
        %806 = vmatpush.msra.mxu0 %v643
        %807 = vmatpush.msra.mxu0 %v641
        %808 = vmatpush.msra.mxu0 %v639
        %809 = vmatmul.f32.gmra.mxu0 %v554
        %v810 = vpop.f32.mrf.mxu0
        %v811 = vadd.f32 %v770, %v810
        %812 = vmatmul.f32.gmra.mxu0 %v558
        %v813 = vpop.f32.mrf.mxu0
        %v814 = vadd.f32 %v773, %v813
        %815 = vmatmul.f32.gmra.mxu0 %v564
        %v816 = vpop.f32.mrf.mxu0
        %v817 = vadd.f32 %v776, %v816
        %818 = vmatmul.f32.gmra.mxu0 %v568
        %v819 = vpop.f32.mrf.mxu0
        %v820 = vadd.f32 %v779, %v819
        %821 = vmatmul.f32.gmra.mxu0 %v574
        %v822 = vpop.f32.mrf.mxu0
        %v823 = vadd.f32 %v782, %v822
        %824 = vmatmul.f32.gmra.mxu0 %v578
        %v825 = vpop.f32.mrf.mxu0
        %v826 = vadd.f32 %v785, %v825
        %827 = vmatmul.f32.gmra.mxu0 %v584
        %v828 = vpop.f32.mrf.mxu0
        %v829 = vadd.f32 %v788, %v828
        %830 = vmatmul.f32.gmra.mxu0 %v588
        %v831 = vpop.f32.mrf.mxu0
        %v832 = vadd.f32 %v791, %v831
        %833 = vdwg.mxu0
        %834 = vmatpush.msra.mxu0 %v474
        %835 = vmatpush.msra.mxu0 %v472
        %836 = vmatpush.msra.mxu0 %v470
        %837 = vmatpush.msra.mxu0 %v468
        %838 = vmatpush.msra.mxu0 %v466
        %839 = vmatpush.msra.mxu0 %v464
        %840 = vmatpush.msra.mxu0 %v462
        %841 = vmatpush.msra.mxu0 %v460
        %842 = vmatpush.msra.mxu0 %v458
        %843 = vmatpush.msra.mxu0 %v456
        %844 = vmatpush.msra.mxu0 %v454
        %845 = vmatpush.msra.mxu0 %v452
        %846 = vmatpush.msra.mxu0 %v450
        %847 = vmatpush.msra.mxu0 %v448
        %848 = vmatpush.msra.mxu0 %v446
        %849 = vmatpush.msra.mxu0 %v444
        %850 = vmatmul.f32.gmra.mxu0 %v428
        %v851 = vpop.f32.mrf.mxu0
        %v852 = vadd.f32 %v729, %v851
        %853 = vmatmul.f32.gmra.mxu0 %v430
        %v854 = vpop.f32.mrf.mxu0
        %v855 = vadd.f32 %v732, %v854
        %856 = vmatmul.f32.gmra.mxu0 %v432
        %v857 = vpop.f32.mrf.mxu0
        %v858 = vadd.f32 %v735, %v857
        %859 = vmatmul.f32.gmra.mxu0 %v434
        %v860 = vpop.f32.mrf.mxu0
        %v861 = vadd.f32 %v738, %v860
        %862 = vmatmul.f32.gmra.mxu0 %v436
        %v863 = vpop.f32.mrf.mxu0
        %v864 = vadd.f32 %v741, %v863
        %865 = vmatmul.f32.gmra.mxu0 %v438
        %v866 = vpop.f32.mrf.mxu0
        %v867 = vadd.f32 %v744, %v866
        %868 = vmatmul.f32.gmra.mxu0 %v440
        %v869 = vpop.f32.mrf.mxu0
        %v870 = vadd.f32 %v747, %v869
        %871 = vmatmul.f32.gmra.mxu0 %v442
        %v872 = vpop.f32.mrf.mxu0
        %v873 = vadd.f32 %v750, %v872
        %874 = vdwg.mxu0
        %875 = vmatpush.msra.mxu0 %v506
        %876 = vmatpush.msra.mxu0 %v504
        %877 = vmatpush.msra.mxu0 %v502
        %878 = vmatpush.msra.mxu0 %v500
        %879 = vmatpush.msra.mxu0 %v498
        %880 = vmatpush.msra.mxu0 %v496
        %881 = vmatpush.msra.mxu0 %v494
        %882 = vmatpush.msra.mxu0 %v492
        %883 = vmatpush.msra.mxu0 %v490
        %884 = vmatpush.msra.mxu0 %v488
        %885 = vmatpush.msra.mxu0 %v486
        %886 = vmatpush.msra.mxu0 %v484
        %887 = vmatpush.msra.mxu0 %v482
        %888 = vmatpush.msra.mxu0 %v480
        %889 = vmatpush.msra.mxu0 %v478
        %890 = vmatpush.msra.mxu0 %v476
        %891 = vmatmul.f32.gmra.mxu0 %v429
        %v892 = vpop.f32.mrf.mxu0
        %v893 = vadd.f32 %v852, %v892
        %894 = vmatmul.f32.gmra.mxu0 %v431
        %v895 = vpop.f32.mrf.mxu0
        %v896 = vadd.f32 %v855, %v895
        %897 = vmatmul.f32.gmra.mxu0 %v433
        %v898 = vpop.f32.mrf.mxu0
        %v899 = vadd.f32 %v858, %v898
        %900 = vmatmul.f32.gmra.mxu0 %v435
        %v901 = vpop.f32.mrf.mxu0
        %v902 = vadd.f32 %v861, %v901
        %903 = vmatmul.f32.gmra.mxu0 %v437
        %v904 = vpop.f32.mrf.mxu0
        %v905 = vadd.f32 %v864, %v904
        %906 = vmatmul.f32.gmra.mxu0 %v439
        %v907 = vpop.f32.mrf.mxu0
        %v908 = vadd.f32 %v867, %v907
        %909 = vmatmul.f32.gmra.mxu0 %v441
        %v910 = vpop.f32.mrf.mxu0
        %v911 = vadd.f32 %v870, %v910
        %912 = vmatmul.f32.gmra.mxu0 %v443
        %v913 = vpop.f32.mrf.mxu0
        %v914 = vadd.f32 %v873, %v913
        %915 = vdwg.mxu0
        %916 = vmatpush.msra.mxu0 %v475
        %917 = vmatpush.msra.mxu0 %v473
        %918 = vmatpush.msra.mxu0 %v471
        %919 = vmatpush.msra.mxu0 %v469
        %920 = vmatpush.msra.mxu0 %v467
        %921 = vmatpush.msra.mxu0 %v465
        %922 = vmatpush.msra.mxu0 %v463
        %923 = vmatpush.msra.mxu0 %v461
        %924 = vmatpush.msra.mxu0 %v459
        %925 = vmatpush.msra.mxu0 %v457
        %926 = vmatpush.msra.mxu0 %v455
        %927 = vmatpush.msra.mxu0 %v453
        %928 = vmatpush.msra.mxu0 %v451
        %929 = vmatpush.msra.mxu0 %v449
        %930 = vmatpush.msra.mxu0 %v447
        %931 = vmatpush.msra.mxu0 %v445
        %932 = vmatmul.f32.gmra.mxu0 %v428
        %v933 = vpop.f32.mrf.mxu0
        %v934 = vadd.f32 %v811, %v933
        %935 = vmatmul.f32.gmra.mxu0 %v430
        %v936 = vpop.f32.mrf.mxu0
        %v937 = vadd.f32 %v814, %v936
        %938 = vmatmul.f32.gmra.mxu0 %v432
        %v939 = vpop.f32.mrf.mxu0
        %v940 = vadd.f32 %v817, %v939
        %941 = vmatmul.f32.gmra.mxu0 %v434
        %v942 = vpop.f32.mrf.mxu0
        %v943 = vadd.f32 %v820, %v942
        %944 = vmatmul.f32.gmra.mxu0 %v436
        %v945 = vpop.f32.mrf.mxu0
        %v946 = vadd.f32 %v823, %v945
        %947 = vmatmul.f32.gmra.mxu0 %v438
        %v948 = vpop.f32.mrf.mxu0
        %v949 = vadd.f32 %v826, %v948
        %950 = vmatmul.f32.gmra.mxu0 %v440
        %v951 = vpop.f32.mrf.mxu0
        %v952 = vadd.f32 %v829, %v951
        %953 = vmatmul.f32.gmra.mxu0 %v442
        %v954 = vpop.f32.mrf.mxu0
        %v955 = vadd.f32 %v832, %v954
        %956 = vdwg.mxu0
        %957 = vmatpush.msra.mxu0 %v507
        %958 = vmatpush.msra.mxu0 %v505
        %959 = vmatpush.msra.mxu0 %v503
        %960 = vmatpush.msra.mxu0 %v501
        %961 = vmatpush.msra.mxu0 %v499
        %962 = vmatpush.msra.mxu0 %v497
        %963 = vmatpush.msra.mxu0 %v495
        %964 = vmatpush.msra.mxu0 %v493
        %965 = vmatpush.msra.mxu0 %v491
        %966 = vmatpush.msra.mxu0 %v489
        %967 = vmatpush.msra.mxu0 %v487
        %968 = vmatpush.msra.mxu0 %v485
        %969 = vmatpush.msra.mxu0 %v483
        %970 = vmatpush.msra.mxu0 %v481
        %971 = vmatpush.msra.mxu0 %v479
        %972 = vmatpush.msra.mxu0 %v477
        %973 = vmatmul.f32.gmra.mxu0 %v429
        %v974 = vpop.f32.mrf.mxu0
        %v975 = vadd.f32 %v934, %v974
        %976 = vmatmul.f32.gmra.mxu0 %v431
        %v977 = vpop.f32.mrf.mxu0
        %v978 = vadd.f32 %v937, %v977
        %979 = vmatmul.f32.gmra.mxu0 %v433
        %v980 = vpop.f32.mrf.mxu0
        %v981 = vadd.f32 %v940, %v980
        %982 = vmatmul.f32.gmra.mxu0 %v435
        %v983 = vpop.f32.mrf.mxu0
        %v984 = vadd.f32 %v943, %v983
        %985 = vmatmul.f32.gmra.mxu0 %v437
        %v986 = vpop.f32.mrf.mxu0
        %v987 = vadd.f32 %v946, %v986
        %988 = vmatmul.f32.gmra.mxu0 %v439
        %v989 = vpop.f32.mrf.mxu0
        %v990 = vadd.f32 %v949, %v989
        %991 = vmatmul.f32.gmra.mxu0 %v441
        %v992 = vpop.f32.mrf.mxu0
        %v993 = vadd.f32 %v952, %v992
        %994 = vmatmul.f32.gmra.mxu0 %v443
        %v995 = vpop.f32.mrf.mxu0
        %v996 = vadd.f32 %v955, %v995
        %997 = vdwg.mxu0
        %v998 = vld [vmem:[#allocation2] sm:$0xfc]
        %v999 = vld [vmem:[#allocation2 + $0x8] sm:$0xfc]
        %v1000 = vld [vmem:[#allocation2 + $0x20] sm:$0x3]
        %v1001 = vld [vmem:[#allocation2 + $0x28] sm:$0x3]
        %v1002 = vld [vmem:[#allocation2 + $0x30] sm:$0xfc]
        %v1003 = vld [vmem:[#allocation2 + $0x38] sm:$0xfc]
        %v1004 = vld [vmem:[#allocation2 + $0x50] sm:$0x3]
        %v1005 = vld [vmem:[#allocation2 + $0x58] sm:$0x3]
        %v1006 = vld [vmem:[#allocation2 + $0x60] sm:$0xfc]
        %v1007 = vld [vmem:[#allocation2 + $0x68] sm:$0xfc]
        %v1008 = vld [vmem:[#allocation2 + $0x80] sm:$0x3]
        %v1009 = vld [vmem:[#allocation2 + $0x88] sm:$0x3]
        %v1010 = vld [vmem:[#allocation2 + $0x90] sm:$0xfc]
        %v1011 = vld [vmem:[#allocation2 + $0x98] sm:$0xfc]
        %v1012 = vld [vmem:[#allocation2 + $0xb0] sm:$0x3]
        %v1013 = vld [vmem:[#allocation2 + $0xb8] sm:$0x3]
        %vm1030 = vcmask 1045504
        %v1031 = vrot.slane %v998, 2
        %v1032 = vrot.slane %v430, 2
        %v1033 = vsel %vm1030, %v1031, %v1032
        %v1034 = vrot.slane %v999, 2
        %v1035 = vrot.slane %v431, 2
        %v1036 = vsel %vm1030, %v1034, %v1035
        %v1037 = vrot.slane %v1000, 2
        %v1038 = vsel %vm1030, %v1032, %v1037
        %v1039 = vrot.slane %v1001, 2
        %v1040 = vsel %vm1030, %v1035, %v1039
        %v1041 = vrot.slane %v1002, 2
        %v1042 = vrot.slane %v434, 2
        %v1043 = vsel %vm1030, %v1041, %v1042
        %v1044 = vrot.slane %v1003, 2
        %v1045 = vrot.slane %v435, 2
        %v1046 = vsel %vm1030, %v1044, %v1045
        %v1047 = vrot.slane %v1004, 2
        %v1048 = vsel %vm1030, %v1042, %v1047
        %v1049 = vrot.slane %v1005, 2
        %v1050 = vsel %vm1030, %v1045, %v1049
        %v1051 = vrot.slane %v1006, 2
        %v1052 = vrot.slane %v438, 2
        %v1053 = vsel %vm1030, %v1051, %v1052
        %v1054 = vrot.slane %v1007, 2
        %v1055 = vrot.slane %v439, 2
        %v1056 = vsel %vm1030, %v1054, %v1055
        %v1057 = vrot.slane %v1008, 2
        %v1058 = vsel %vm1030, %v1052, %v1057
        %v1059 = vrot.slane %v1009, 2
        %v1060 = vsel %vm1030, %v1055, %v1059
        %v1061 = vrot.slane %v1010, 2
        %v1062 = vrot.slane %v442, 2
        %v1063 = vsel %vm1030, %v1061, %v1062
        %v1064 = vrot.slane %v1011, 2
        %v1065 = vrot.slane %v443, 2
        %v1066 = vsel %vm1030, %v1064, %v1065
        %v1067 = vrot.slane %v1012, 2
        %v1068 = vsel %vm1030, %v1062, %v1067
        %v1069 = vrot.slane %v1013, 2
        %v1070 = vsel %vm1030, %v1065, %v1069
        %s1087 = scalar_lea.vmem [#allocation7], 1024
        %v1088 = vld [vmem:[%s1087] sm:$0xff]
        %v1089 = vld [vmem:[%s1087 + $0x8] sm:$0xff]
        %v1090 = vld [vmem:[%s1087 + $0x10] sm:$0xff]
        %v1091 = vld [vmem:[%s1087 + $0x18] sm:$0xff]
        %v1092 = vld [vmem:[%s1087 + $0x20] sm:$0xff]
        %v1093 = vld [vmem:[%s1087 + $0x28] sm:$0xff]
        %v1094 = vld [vmem:[%s1087 + $0x30] sm:$0xff]
        %v1095 = vld [vmem:[%s1087 + $0x38] sm:$0xff]
        %v1096 = vld [vmem:[%s1087 + $0x40] sm:$0xff]
        %v1097 = vld [vmem:[%s1087 + $0x48] sm:$0xff]
        %v1098 = vld [vmem:[%s1087 + $0x50] sm:$0xff]
        %v1099 = vld [vmem:[%s1087 + $0x58] sm:$0xff]
        %v1100 = vld [vmem:[%s1087 + $0x60] sm:$0xff]
        %v1101 = vld [vmem:[%s1087 + $0x68] sm:$0xff]
        %v1102 = vld [vmem:[%s1087 + $0x70] sm:$0xff]
        %v1103 = vld [vmem:[%s1087 + $0x78] sm:$0xff]
        %v1104 = vld [vmem:[%s1087 + $0x80] sm:$0xff]
        %v1105 = vld [vmem:[%s1087 + $0x88] sm:$0xff]
        %v1106 = vld [vmem:[%s1087 + $0x90] sm:$0xff]
        %v1107 = vld [vmem:[%s1087 + $0x98] sm:$0xff]
        %v1108 = vld [vmem:[%s1087 + $0xa0] sm:$0xff]
        %v1109 = vld [vmem:[%s1087 + $0xa8] sm:$0xff]
        %v1110 = vld [vmem:[%s1087 + $0xb0] sm:$0xff]
        %v1111 = vld [vmem:[%s1087 + $0xb8] sm:$0xff]
        %v1112 = vld [vmem:[%s1087 + $0xc0] sm:$0xff]
        %v1113 = vld [vmem:[%s1087 + $0xc8] sm:$0xff]
        %v1114 = vld [vmem:[%s1087 + $0xd0] sm:$0xff]
        %v1115 = vld [vmem:[%s1087 + $0xd8] sm:$0xff]
        %v1116 = vld [vmem:[%s1087 + $0xe0] sm:$0xff]
        %v1117 = vld [vmem:[%s1087 + $0xe8] sm:$0xff]
        %v1118 = vld [vmem:[%s1087 + $0xf0] sm:$0xff]
        %v1119 = vld [vmem:[%s1087 + $0xf8] sm:$0xff]
        %v1120 = vld [vmem:[%s1087 + $0x100] sm:$0xff]
        %v1121 = vld [vmem:[%s1087 + $0x108] sm:$0xff]
        %v1122 = vld [vmem:[%s1087 + $0x110] sm:$0xff]
        %v1123 = vld [vmem:[%s1087 + $0x118] sm:$0xff]
        %v1124 = vld [vmem:[%s1087 + $0x120] sm:$0xff]
        %v1125 = vld [vmem:[%s1087 + $0x128] sm:$0xff]
        %v1126 = vld [vmem:[%s1087 + $0x130] sm:$0xff]
        %v1127 = vld [vmem:[%s1087 + $0x138] sm:$0xff]
        %v1128 = vld [vmem:[%s1087 + $0x140] sm:$0xff]
        %v1129 = vld [vmem:[%s1087 + $0x148] sm:$0xff]
        %v1130 = vld [vmem:[%s1087 + $0x150] sm:$0xff]
        %v1131 = vld [vmem:[%s1087 + $0x158] sm:$0xff]
        %v1132 = vld [vmem:[%s1087 + $0x160] sm:$0xff]
        %v1133 = vld [vmem:[%s1087 + $0x168] sm:$0xff]
        %v1134 = vld [vmem:[%s1087 + $0x170] sm:$0xff]
        %v1135 = vld [vmem:[%s1087 + $0x178] sm:$0xff]
        %v1136 = vld [vmem:[%s1087 + $0x180] sm:$0xff]
        %v1137 = vld [vmem:[%s1087 + $0x188] sm:$0xff]
        %v1138 = vld [vmem:[%s1087 + $0x190] sm:$0xff]
        %v1139 = vld [vmem:[%s1087 + $0x198] sm:$0xff]
        %v1140 = vld [vmem:[%s1087 + $0x1a0] sm:$0xff]
        %v1141 = vld [vmem:[%s1087 + $0x1a8] sm:$0xff]
        %v1142 = vld [vmem:[%s1087 + $0x1b0] sm:$0xff]
        %v1143 = vld [vmem:[%s1087 + $0x1b8] sm:$0xff]
        %v1144 = vld [vmem:[%s1087 + $0x1c0] sm:$0xff]
        %v1145 = vld [vmem:[%s1087 + $0x1c8] sm:$0xff]
        %v1146 = vld [vmem:[%s1087 + $0x1d0] sm:$0xff]
        %v1147 = vld [vmem:[%s1087 + $0x1d8] sm:$0xff]
        %v1148 = vld [vmem:[%s1087 + $0x1e0] sm:$0xff]
        %v1149 = vld [vmem:[%s1087 + $0x1e8] sm:$0xff]
        %v1150 = vld [vmem:[%s1087 + $0x1f0] sm:$0xff]
        %v1151 = vld [vmem:[%s1087 + $0x1f8] sm:$0xff]
        %1152 = vmatpush.msra.mxu0 %v1118
        %1153 = vmatpush.msra.mxu0 %v1116
        %1154 = vmatpush.msra.mxu0 %v1114
        %1155 = vmatpush.msra.mxu0 %v1112
        %1156 = vmatpush.msra.mxu0 %v1110
        %1157 = vmatpush.msra.mxu0 %v1108
        %1158 = vmatpush.msra.mxu0 %v1106
        %1159 = vmatpush.msra.mxu0 %v1104
        %1160 = vmatpush.msra.mxu0 %v1102
        %1161 = vmatpush.msra.mxu0 %v1100
        %1162 = vmatpush.msra.mxu0 %v1098
        %1163 = vmatpush.msra.mxu0 %v1096
        %1164 = vmatpush.msra.mxu0 %v1094
        %1165 = vmatpush.msra.mxu0 %v1092
        %1166 = vmatpush.msra.mxu0 %v1090
        %1167 = vmatpush.msra.mxu0 %v1088
        %1168 = vmatmul.f32.gmra.mxu0 %v1033
        %v1169 = vpop.f32.mrf.mxu0
        %v1170 = vadd.f32 0.0, %v1169
        %1171 = vmatmul.f32.gmra.mxu0 %v1038
        %v1172 = vpop.f32.mrf.mxu0
        %v1173 = vadd.f32 0.0, %v1172
        %1174 = vmatmul.f32.gmra.mxu0 %v1043
        %v1175 = vpop.f32.mrf.mxu0
        %v1176 = vadd.f32 0.0, %v1175
        %1177 = vmatmul.f32.gmra.mxu0 %v1048
        %v1178 = vpop.f32.mrf.mxu0
        %v1179 = vadd.f32 0.0, %v1178
        %1180 = vmatmul.f32.gmra.mxu0 %v1053
        %v1181 = vpop.f32.mrf.mxu0
        %v1182 = vadd.f32 0.0, %v1181
        %1183 = vmatmul.f32.gmra.mxu0 %v1058
        %v1184 = vpop.f32.mrf.mxu0
        %v1185 = vadd.f32 0.0, %v1184
        %1186 = vmatmul.f32.gmra.mxu0 %v1063
        %v1187 = vpop.f32.mrf.mxu0
        %v1188 = vadd.f32 0.0, %v1187
        %1189 = vmatmul.f32.gmra.mxu0 %v1068
        %v1190 = vpop.f32.mrf.mxu0
        %v1191 = vadd.f32 0.0, %v1190
        %1192 = vdwg.mxu0
        %1193 = vmatpush.msra.mxu0 %v1150
        %1194 = vmatpush.msra.mxu0 %v1148
        %1195 = vmatpush.msra.mxu0 %v1146
        %1196 = vmatpush.msra.mxu0 %v1144
        %1197 = vmatpush.msra.mxu0 %v1142
        %1198 = vmatpush.msra.mxu0 %v1140
        %1199 = vmatpush.msra.mxu0 %v1138
        %1200 = vmatpush.msra.mxu0 %v1136
        %1201 = vmatpush.msra.mxu0 %v1134
        %1202 = vmatpush.msra.mxu0 %v1132
        %1203 = vmatpush.msra.mxu0 %v1130
        %1204 = vmatpush.msra.mxu0 %v1128
        %1205 = vmatpush.msra.mxu0 %v1126
        %1206 = vmatpush.msra.mxu0 %v1124
        %1207 = vmatpush.msra.mxu0 %v1122
        %1208 = vmatpush.msra.mxu0 %v1120
        %1209 = vmatmul.f32.gmra.mxu0 %v1036
        %v1210 = vpop.f32.mrf.mxu0
        %v1211 = vadd.f32 %v1170, %v1210
        %1212 = vmatmul.f32.gmra.mxu0 %v1040
        %v1213 = vpop.f32.mrf.mxu0
        %v1214 = vadd.f32 %v1173, %v1213
        %1215 = vmatmul.f32.gmra.mxu0 %v1046
        %v1216 = vpop.f32.mrf.mxu0
        %v1217 = vadd.f32 %v1176, %v1216
        %1218 = vmatmul.f32.gmra.mxu0 %v1050
        %v1219 = vpop.f32.mrf.mxu0
        %v1220 = vadd.f32 %v1179, %v1219
        %1221 = vmatmul.f32.gmra.mxu0 %v1056
        %v1222 = vpop.f32.mrf.mxu0
        %v1223 = vadd.f32 %v1182, %v1222
        %1224 = vmatmul.f32.gmra.mxu0 %v1060
        %v1225 = vpop.f32.mrf.mxu0
        %v1226 = vadd.f32 %v1185, %v1225
        %1227 = vmatmul.f32.gmra.mxu0 %v1066
        %v1228 = vpop.f32.mrf.mxu0
        %v1229 = vadd.f32 %v1188, %v1228
        %1230 = vmatmul.f32.gmra.mxu0 %v1070
        %v1231 = vpop.f32.mrf.mxu0
        %v1232 = vadd.f32 %v1191, %v1231
        %1233 = vdwg.mxu0
        %1234 = vmatpush.msra.mxu0 %v1119
        %1235 = vmatpush.msra.mxu0 %v1117
        %1236 = vmatpush.msra.mxu0 %v1115
        %1237 = vmatpush.msra.mxu0 %v1113
        %1238 = vmatpush.msra.mxu0 %v1111
        %1239 = vmatpush.msra.mxu0 %v1109
        %1240 = vmatpush.msra.mxu0 %v1107
        %1241 = vmatpush.msra.mxu0 %v1105
        %1242 = vmatpush.msra.mxu0 %v1103
        %1243 = vmatpush.msra.mxu0 %v1101
        %1244 = vmatpush.msra.mxu0 %v1099
        %1245 = vmatpush.msra.mxu0 %v1097
        %1246 = vmatpush.msra.mxu0 %v1095
        %1247 = vmatpush.msra.mxu0 %v1093
        %1248 = vmatpush.msra.mxu0 %v1091
        %1249 = vmatpush.msra.mxu0 %v1089
        %1250 = vmatmul.f32.gmra.mxu0 %v1033
        %v1251 = vpop.f32.mrf.mxu0
        %v1252 = vadd.f32 0.0, %v1251
        %1253 = vmatmul.f32.gmra.mxu0 %v1038
        %v1254 = vpop.f32.mrf.mxu0
        %v1255 = vadd.f32 0.0, %v1254
        %1256 = vmatmul.f32.gmra.mxu0 %v1043
        %v1257 = vpop.f32.mrf.mxu0
        %v1258 = vadd.f32 0.0, %v1257
        %1259 = vmatmul.f32.gmra.mxu0 %v1048
        %v1260 = vpop.f32.mrf.mxu0
        %v1261 = vadd.f32 0.0, %v1260
        %1262 = vmatmul.f32.gmra.mxu0 %v1053
        %v1263 = vpop.f32.mrf.mxu0
        %v1264 = vadd.f32 0.0, %v1263
        %1265 = vmatmul.f32.gmra.mxu0 %v1058
        %v1266 = vpop.f32.mrf.mxu0
        %v1267 = vadd.f32 0.0, %v1266
        %1268 = vmatmul.f32.gmra.mxu0 %v1063
        %v1269 = vpop.f32.mrf.mxu0
        %v1270 = vadd.f32 0.0, %v1269
        %1271 = vmatmul.f32.gmra.mxu0 %v1068
        %v1272 = vpop.f32.mrf.mxu0
        %v1273 = vadd.f32 0.0, %v1272
        %1274 = vdwg.mxu0
        %1275 = vmatpush.msra.mxu0 %v1151
        %1276 = vmatpush.msra.mxu0 %v1149
        %1277 = vmatpush.msra.mxu0 %v1147
        %1278 = vmatpush.msra.mxu0 %v1145
        %1279 = vmatpush.msra.mxu0 %v1143
        %1280 = vmatpush.msra.mxu0 %v1141
        %1281 = vmatpush.msra.mxu0 %v1139
        %1282 = vmatpush.msra.mxu0 %v1137
        %1283 = vmatpush.msra.mxu0 %v1135
        %1284 = vmatpush.msra.mxu0 %v1133
        %1285 = vmatpush.msra.mxu0 %v1131
        %1286 = vmatpush.msra.mxu0 %v1129
        %1287 = vmatpush.msra.mxu0 %v1127
        %1288 = vmatpush.msra.mxu0 %v1125
        %1289 = vmatpush.msra.mxu0 %v1123
        %1290 = vmatpush.msra.mxu0 %v1121
        %1291 = vmatmul.f32.gmra.mxu0 %v1036
        %v1292 = vpop.f32.mrf.mxu0
        %v1293 = vadd.f32 %v1252, %v1292
        %1294 = vmatmul.f32.gmra.mxu0 %v1040
        %v1295 = vpop.f32.mrf.mxu0
        %v1296 = vadd.f32 %v1255, %v1295
        %1297 = vmatmul.f32.gmra.mxu0 %v1046
        %v1298 = vpop.f32.mrf.mxu0
        %v1299 = vadd.f32 %v1258, %v1298
        %1300 = vmatmul.f32.gmra.mxu0 %v1050
        %v1301 = vpop.f32.mrf.mxu0
        %v1302 = vadd.f32 %v1261, %v1301
        %1303 = vmatmul.f32.gmra.mxu0 %v1056
        %v1304 = vpop.f32.mrf.mxu0
        %v1305 = vadd.f32 %v1264, %v1304
        %1306 = vmatmul.f32.gmra.mxu0 %v1060
        %v1307 = vpop.f32.mrf.mxu0
        %v1308 = vadd.f32 %v1267, %v1307
        %1309 = vmatmul.f32.gmra.mxu0 %v1066
        %v1310 = vpop.f32.mrf.mxu0
        %v1311 = vadd.f32 %v1270, %v1310
        %1312 = vmatmul.f32.gmra.mxu0 %v1070
        %v1313 = vpop.f32.mrf.mxu0
        %v1314 = vadd.f32 %v1273, %v1313
        %1315 = vdwg.mxu0
        %v1316 = vadd.f32 %v893, %v1211
        %v1317 = vadd.f32 %v975, %v1293
        %v1318 = vadd.f32 %v896, %v1214
        %v1319 = vadd.f32 %v978, %v1296
        %v1320 = vadd.f32 %v899, %v1217
        %v1321 = vadd.f32 %v981, %v1299
        %v1322 = vadd.f32 %v902, %v1220
        %v1323 = vadd.f32 %v984, %v1302
        %v1324 = vadd.f32 %v905, %v1223
        %v1325 = vadd.f32 %v987, %v1305
        %v1326 = vadd.f32 %v908, %v1226
        %v1327 = vadd.f32 %v990, %v1308
        %v1328 = vadd.f32 %v911, %v1229
        %v1329 = vadd.f32 %v993, %v1311
        %v1330 = vadd.f32 %v914, %v1232
        %v1331 = vadd.f32 %v996, %v1314
        %v1332 = vld [vmem:[%s3] sm:$0x3]
        %v1334 = vperm.slane %v1332, 0
        %v1335 = vperm.slane %v1332, 1
        %v1338 = vadd.f32 %v1316, %v1334
        %v1339 = vadd.f32 %v1317, %v1335
        %v1340 = vadd.f32 %v1318, %v1334
        %v1341 = vadd.f32 %v1319, %v1335
        %v1342 = vadd.f32 %v1320, %v1334
        %v1343 = vadd.f32 %v1321, %v1335
        %v1344 = vadd.f32 %v1322, %v1334
        %v1345 = vadd.f32 %v1323, %v1335
        %v1346 = vadd.f32 %v1324, %v1334
        %v1347 = vadd.f32 %v1325, %v1335
        %v1348 = vadd.f32 %v1326, %v1334
        %v1349 = vadd.f32 %v1327, %v1335
        %v1350 = vadd.f32 %v1328, %v1334
        %v1351 = vadd.f32 %v1329, %v1335
        %v1352 = vadd.f32 %v1330, %v1334
        %v1353 = vadd.f32 %v1331, %v1335
        %v1354 = vmax.f32 %v1338, 0.0
        %v1355 = vmax.f32 %v1339, 0.0
        %v1356 = vmax.f32 %v1340, 0.0
        %v1357 = vmax.f32 %v1341, 0.0
        %v1358 = vmax.f32 %v1342, 0.0
        %v1359 = vmax.f32 %v1343, 0.0
        %v1360 = vmax.f32 %v1344, 0.0
        %v1361 = vmax.f32 %v1345, 0.0
        %v1362 = vmax.f32 %v1346, 0.0
        %v1363 = vmax.f32 %v1347, 0.0
        %v1364 = vmax.f32 %v1348, 0.0
        %v1365 = vmax.f32 %v1349, 0.0
        %v1366 = vmax.f32 %v1350, 0.0
        %v1367 = vmax.f32 %v1351, 0.0
        %v1368 = vmax.f32 %v1352, 0.0
        %v1369 = vmax.f32 %v1353, 0.0
        %1370 = vst.msk [vmem:[#allocation3] ss:$8 sm:$0x3] %vm299, 0.0
        %1371 = vst.msk [vmem:[#allocation3] ss:$8 sm:$0x0] %vm299, 0.0
        %s1372 = scalar_lea.vmem [#allocation3], 48
        %1373 = vst.msk [vmem:[%s1372] ss:$8 sm:$0x3] %vm299, 0.0
        %1374 = vst.msk [vmem:[%s1372] ss:$8 sm:$0x0] %vm299, 0.0
        %s1375 = scalar_lea.vmem [#allocation3], 96
        %1376 = vst.msk [vmem:[%s1375] ss:$8 sm:$0x3] %vm299, 0.0
        %1377 = vst.msk [vmem:[%s1375] ss:$8 sm:$0x0] %vm299, 0.0
        %s1378 = scalar_lea.vmem [#allocation3], 144
        %1379 = vst.msk [vmem:[%s1378] ss:$8 sm:$0x3] %vm299, 0.0
        %1380 = vst.msk [vmem:[%s1378] ss:$8 sm:$0x0] %vm299, 0.0
        %s1381 = scalar_lea.vmem [#allocation3], 33
        %1382 = vst.msk [vmem:[%s1381] ss:$8 sm:$0x3] %vm299, 0.0
        %1383 = vst.msk [vmem:[%s1381] ss:$8 sm:$0x0] %vm299, 0.0
        %s1384 = scalar_lea.vmem [#allocation3], 81
        %1385 = vst.msk [vmem:[%s1384] ss:$8 sm:$0x3] %vm299, 0.0
        %1386 = vst.msk [vmem:[%s1384] ss:$8 sm:$0x0] %vm299, 0.0
        %s1387 = scalar_lea.vmem [#allocation3], 129
        %1388 = vst.msk [vmem:[%s1387] ss:$8 sm:$0x3] %vm299, 0.0
        %1389 = vst.msk [vmem:[%s1387] ss:$8 sm:$0x0] %vm299, 0.0
        %s1390 = scalar_lea.vmem [#allocation3], 177
        %1391 = vst.msk [vmem:[%s1390] ss:$8 sm:$0x3] %vm299, 0.0
        %1392 = vst.msk [vmem:[%s1390] ss:$8 sm:$0x0] %vm299, 0.0
        %v1409 = vrot.slane %v1354, 7
        %v1410 = vrot.slane %v1355, 7
        %v1411 = vrot.slane %v1356, 7
        %v1412 = vsel %vm355, %v1409, %v1411
        %v1413 = vrot.slane %v1357, 7
        %v1414 = vsel %vm355, %v1410, %v1413
        %v1415 = vrot.slane %v1358, 7
        %v1416 = vrot.slane %v1359, 7
        %v1417 = vrot.slane %v1360, 7
        %v1418 = vsel %vm355, %v1415, %v1417
        %v1419 = vrot.slane %v1361, 7
        %v1420 = vsel %vm355, %v1416, %v1419
        %v1421 = vrot.slane %v1362, 7
        %v1422 = vrot.slane %v1363, 7
        %v1423 = vrot.slane %v1364, 7
        %v1424 = vsel %vm355, %v1421, %v1423
        %v1425 = vrot.slane %v1365, 7
        %v1426 = vsel %vm355, %v1422, %v1425
        %v1427 = vrot.slane %v1366, 7
        %v1428 = vrot.slane %v1367, 7
        %v1429 = vrot.slane %v1368, 7
        %v1430 = vsel %vm355, %v1427, %v1429
        %v1431 = vrot.slane %v1369, 7
        %v1432 = vsel %vm355, %v1428, %v1431
        %1457 = vst [vmem:[#allocation3] sm:$0xfe] %v1409
        %1458 = vst [vmem:[#allocation3 + $0x8] sm:$0xfe] %v1410
        %1459 = vst [vmem:[#allocation3 + $0x10] sm:$0xff] %v1412
        %1460 = vst [vmem:[#allocation3 + $0x18] sm:$0xff] %v1414
        %1461 = vst [vmem:[#allocation3 + $0x20] sm:$0x1] %v1411
        %1462 = vst [vmem:[#allocation3 + $0x28] sm:$0x1] %v1413
        %1463 = vst [vmem:[#allocation3 + $0x30] sm:$0xfe] %v1415
        %1464 = vst [vmem:[#allocation3 + $0x38] sm:$0xfe] %v1416
        %1465 = vst [vmem:[#allocation3 + $0x40] sm:$0xff] %v1418
        %1466 = vst [vmem:[#allocation3 + $0x48] sm:$0xff] %v1420
        %1467 = vst [vmem:[#allocation3 + $0x50] sm:$0x1] %v1417
        %1468 = vst [vmem:[#allocation3 + $0x58] sm:$0x1] %v1419
        %1469 = vst [vmem:[#allocation3 + $0x60] sm:$0xfe] %v1421
        %1470 = vst [vmem:[#allocation3 + $0x68] sm:$0xfe] %v1422
        %1471 = vst [vmem:[#allocation3 + $0x70] sm:$0xff] %v1424
        %1472 = vst [vmem:[#allocation3 + $0x78] sm:$0xff] %v1426
        %1473 = vst [vmem:[#allocation3 + $0x80] sm:$0x1] %v1423
        %1474 = vst [vmem:[#allocation3 + $0x88] sm:$0x1] %v1425
        %1475 = vst [vmem:[#allocation3 + $0x90] sm:$0xfe] %v1427
        %1476 = vst [vmem:[#allocation3 + $0x98] sm:$0xfe] %v1428
        %1477 = vst [vmem:[#allocation3 + $0xa0] sm:$0xff] %v1430
        %1478 = vst [vmem:[#allocation3 + $0xa8] sm:$0xff] %v1432
        %1479 = vst [vmem:[#allocation3 + $0xb0] sm:$0x1] %v1429
        %1480 = vst [vmem:[#allocation3 + $0xb8] sm:$0x1] %v1431
        %v1481 = vld [vmem:[#allocation3] sm:$0xff]
        %v1482 = vld [vmem:[#allocation3 + $0x8] sm:$0xff]
        %v1483 = vld [vmem:[#allocation3 + $0x10] sm:$0xff]
        %v1484 = vld [vmem:[#allocation3 + $0x18] sm:$0xff]
        %v1485 = vld [vmem:[#allocation3 + $0x30] sm:$0xff]
        %v1486 = vld [vmem:[#allocation3 + $0x38] sm:$0xff]
        %v1487 = vld [vmem:[#allocation3 + $0x40] sm:$0xff]
        %v1488 = vld [vmem:[#allocation3 + $0x48] sm:$0xff]
        %v1489 = vld [vmem:[#allocation3 + $0x60] sm:$0xff]
        %v1490 = vld [vmem:[#allocation3 + $0x68] sm:$0xff]
        %v1491 = vld [vmem:[#allocation3 + $0x70] sm:$0xff]
        %v1492 = vld [vmem:[#allocation3 + $0x78] sm:$0xff]
        %v1493 = vld [vmem:[#allocation3 + $0x90] sm:$0xff]
        %v1494 = vld [vmem:[#allocation3 + $0x98] sm:$0xff]
        %v1495 = vld [vmem:[#allocation3 + $0xa0] sm:$0xff]
        %v1496 = vld [vmem:[#allocation3 + $0xa8] sm:$0xff]
        %v1497 = vld [vmem:[#allocation9] sm:$0xff]
        %v1498 = vld [vmem:[#allocation9 + $0x8] sm:$0xff]
        %v1499 = vld [vmem:[#allocation9 + $0x10] sm:$0xff]
        %v1500 = vld [vmem:[#allocation9 + $0x18] sm:$0xff]
        %v1501 = vld [vmem:[#allocation9 + $0x20] sm:$0xff]
        %v1502 = vld [vmem:[#allocation9 + $0x28] sm:$0xff]
        %v1503 = vld [vmem:[#allocation9 + $0x30] sm:$0xff]
        %v1504 = vld [vmem:[#allocation9 + $0x38] sm:$0xff]
        %v1505 = vld [vmem:[#allocation9 + $0x40] sm:$0xff]
        %v1506 = vld [vmem:[#allocation9 + $0x48] sm:$0xff]
        %v1507 = vld [vmem:[#allocation9 + $0x50] sm:$0xff]
        %v1508 = vld [vmem:[#allocation9 + $0x58] sm:$0xff]
        %v1509 = vld [vmem:[#allocation9 + $0x60] sm:$0xff]
        %v1510 = vld [vmem:[#allocation9 + $0x68] sm:$0xff]
        %v1511 = vld [vmem:[#allocation9 + $0x70] sm:$0xff]
        %v1512 = vld [vmem:[#allocation9 + $0x78] sm:$0xff]
        %v1513 = vld [vmem:[#allocation9 + $0x80] sm:$0xff]
        %v1514 = vld [vmem:[#allocation9 + $0x88] sm:$0xff]
        %v1515 = vld [vmem:[#allocation9 + $0x90] sm:$0xff]
        %v1516 = vld [vmem:[#allocation9 + $0x98] sm:$0xff]
        %v1517 = vld [vmem:[#allocation9 + $0xa0] sm:$0xff]
        %v1518 = vld [vmem:[#allocation9 + $0xa8] sm:$0xff]
        %v1519 = vld [vmem:[#allocation9 + $0xb0] sm:$0xff]
        %v1520 = vld [vmem:[#allocation9 + $0xb8] sm:$0xff]
        %v1521 = vld [vmem:[#allocation9 + $0xc0] sm:$0xff]
        %v1522 = vld [vmem:[#allocation9 + $0xc8] sm:$0xff]
        %v1523 = vld [vmem:[#allocation9 + $0xd0] sm:$0xff]
        %v1524 = vld [vmem:[#allocation9 + $0xd8] sm:$0xff]
        %v1525 = vld [vmem:[#allocation9 + $0xe0] sm:$0xff]
        %v1526 = vld [vmem:[#allocation9 + $0xe8] sm:$0xff]
        %v1527 = vld [vmem:[#allocation9 + $0xf0] sm:$0xff]
        %v1528 = vld [vmem:[#allocation9 + $0xf8] sm:$0xff]
        %v1529 = vld [vmem:[#allocation9 + $0x100] sm:$0xff]
        %v1530 = vld [vmem:[#allocation9 + $0x108] sm:$0xff]
        %v1531 = vld [vmem:[#allocation9 + $0x110] sm:$0xff]
        %v1532 = vld [vmem:[#allocation9 + $0x118] sm:$0xff]
        %v1533 = vld [vmem:[#allocation9 + $0x120] sm:$0xff]
        %v1534 = vld [vmem:[#allocation9 + $0x128] sm:$0xff]
        %v1535 = vld [vmem:[#allocation9 + $0x130] sm:$0xff]
        %v1536 = vld [vmem:[#allocation9 + $0x138] sm:$0xff]
        %v1537 = vld [vmem:[#allocation9 + $0x140] sm:$0xff]
        %v1538 = vld [vmem:[#allocation9 + $0x148] sm:$0xff]
        %v1539 = vld [vmem:[#allocation9 + $0x150] sm:$0xff]
        %v1540 = vld [vmem:[#allocation9 + $0x158] sm:$0xff]
        %v1541 = vld [vmem:[#allocation9 + $0x160] sm:$0xff]
        %v1542 = vld [vmem:[#allocation9 + $0x168] sm:$0xff]
        %v1543 = vld [vmem:[#allocation9 + $0x170] sm:$0xff]
        %v1544 = vld [vmem:[#allocation9 + $0x178] sm:$0xff]
        %v1545 = vld [vmem:[#allocation9 + $0x180] sm:$0xff]
        %v1546 = vld [vmem:[#allocation9 + $0x188] sm:$0xff]
        %v1547 = vld [vmem:[#allocation9 + $0x190] sm:$0xff]
        %v1548 = vld [vmem:[#allocation9 + $0x198] sm:$0xff]
        %v1549 = vld [vmem:[#allocation9 + $0x1a0] sm:$0xff]
        %v1550 = vld [vmem:[#allocation9 + $0x1a8] sm:$0xff]
        %v1551 = vld [vmem:[#allocation9 + $0x1b0] sm:$0xff]
        %v1552 = vld [vmem:[#allocation9 + $0x1b8] sm:$0xff]
        %v1553 = vld [vmem:[#allocation9 + $0x1c0] sm:$0xff]
        %v1554 = vld [vmem:[#allocation9 + $0x1c8] sm:$0xff]
        %v1555 = vld [vmem:[#allocation9 + $0x1d0] sm:$0xff]
        %v1556 = vld [vmem:[#allocation9 + $0x1d8] sm:$0xff]
        %v1557 = vld [vmem:[#allocation9 + $0x1e0] sm:$0xff]
        %v1558 = vld [vmem:[#allocation9 + $0x1e8] sm:$0xff]
        %v1559 = vld [vmem:[#allocation9 + $0x1f0] sm:$0xff]
        %v1560 = vld [vmem:[#allocation9 + $0x1f8] sm:$0xff]
        %v1561 = vld [vmem:[#allocation3] sm:$0xfe]
        %v1562 = vld [vmem:[#allocation3 + $0x8] sm:$0xfe]
        %v1563 = vld [vmem:[#allocation3 + $0x20] sm:$0x1]
        %v1564 = vld [vmem:[#allocation3 + $0x28] sm:$0x1]
        %v1565 = vld [vmem:[#allocation3 + $0x30] sm:$0xfe]
        %v1566 = vld [vmem:[#allocation3 + $0x38] sm:$0xfe]
        %v1567 = vld [vmem:[#allocation3 + $0x50] sm:$0x1]
        %v1568 = vld [vmem:[#allocation3 + $0x58] sm:$0x1]
        %v1569 = vld [vmem:[#allocation3 + $0x60] sm:$0xfe]
        %v1570 = vld [vmem:[#allocation3 + $0x68] sm:$0xfe]
        %v1571 = vld [vmem:[#allocation3 + $0x80] sm:$0x1]
        %v1572 = vld [vmem:[#allocation3 + $0x88] sm:$0x1]
        %v1573 = vld [vmem:[#allocation3 + $0x90] sm:$0xfe]
        %v1574 = vld [vmem:[#allocation3 + $0x98] sm:$0xfe]
        %v1575 = vld [vmem:[#allocation3 + $0xb0] sm:$0x1]
        %v1576 = vld [vmem:[#allocation3 + $0xb8] sm:$0x1]
        %v1601 = vrot.slane %v1561, 1
        %v1602 = vrot.slane %v1483, 1
        %v1603 = vsel %vm548, %v1601, %v1602
        %v1604 = vrot.slane %v1562, 1
        %v1605 = vrot.slane %v1484, 1
        %v1606 = vsel %vm548, %v1604, %v1605
        %v1607 = vrot.slane %v1563, 1
        %v1608 = vsel %vm548, %v1602, %v1607
        %v1609 = vrot.slane %v1564, 1
        %v1610 = vsel %vm548, %v1605, %v1609
        %v1611 = vrot.slane %v1565, 1
        %v1612 = vrot.slane %v1487, 1
        %v1613 = vsel %vm548, %v1611, %v1612
        %v1614 = vrot.slane %v1566, 1
        %v1615 = vrot.slane %v1488, 1
        %v1616 = vsel %vm548, %v1614, %v1615
        %v1617 = vrot.slane %v1567, 1
        %v1618 = vsel %vm548, %v1612, %v1617
        %v1619 = vrot.slane %v1568, 1
        %v1620 = vsel %vm548, %v1615, %v1619
        %v1621 = vrot.slane %v1569, 1
        %v1622 = vrot.slane %v1491, 1
        %v1623 = vsel %vm548, %v1621, %v1622
        %v1624 = vrot.slane %v1570, 1
        %v1625 = vrot.slane %v1492, 1
        %v1626 = vsel %vm548, %v1624, %v1625
        %v1627 = vrot.slane %v1571, 1
        %v1628 = vsel %vm548, %v1622, %v1627
        %v1629 = vrot.slane %v1572, 1
        %v1630 = vsel %vm548, %v1625, %v1629
        %v1631 = vrot.slane %v1573, 1
        %v1632 = vrot.slane %v1495, 1
        %v1633 = vsel %vm548, %v1631, %v1632
        %v1634 = vrot.slane %v1574, 1
        %v1635 = vrot.slane %v1496, 1
        %v1636 = vsel %vm548, %v1634, %v1635
        %v1637 = vrot.slane %v1575, 1
        %v1638 = vsel %vm548, %v1632, %v1637
        %v1639 = vrot.slane %v1576, 1
        %v1640 = vsel %vm548, %v1635, %v1639
        %s1657 = scalar_lea.vmem [#allocation9], 512
        %v1658 = vld [vmem:[%s1657] sm:$0xff]
        %v1659 = vld [vmem:[%s1657 + $0x8] sm:$0xff]
        %v1660 = vld [vmem:[%s1657 + $0x10] sm:$0xff]
        %v1661 = vld [vmem:[%s1657 + $0x18] sm:$0xff]
        %v1662 = vld [vmem:[%s1657 + $0x20] sm:$0xff]
        %v1663 = vld [vmem:[%s1657 + $0x28] sm:$0xff]
        %v1664 = vld [vmem:[%s1657 + $0x30] sm:$0xff]
        %v1665 = vld [vmem:[%s1657 + $0x38] sm:$0xff]
        %v1666 = vld [vmem:[%s1657 + $0x40] sm:$0xff]
        %v1667 = vld [vmem:[%s1657 + $0x48] sm:$0xff]
        %v1668 = vld [vmem:[%s1657 + $0x50] sm:$0xff]
        %v1669 = vld [vmem:[%s1657 + $0x58] sm:$0xff]
        %v1670 = vld [vmem:[%s1657 + $0x60] sm:$0xff]
        %v1671 = vld [vmem:[%s1657 + $0x68] sm:$0xff]
        %v1672 = vld [vmem:[%s1657 + $0x70] sm:$0xff]
        %v1673 = vld [vmem:[%s1657 + $0x78] sm:$0xff]
        %v1674 = vld [vmem:[%s1657 + $0x80] sm:$0xff]
        %v1675 = vld [vmem:[%s1657 + $0x88] sm:$0xff]
        %v1676 = vld [vmem:[%s1657 + $0x90] sm:$0xff]
        %v1677 = vld [vmem:[%s1657 + $0x98] sm:$0xff]
        %v1678 = vld [vmem:[%s1657 + $0xa0] sm:$0xff]
        %v1679 = vld [vmem:[%s1657 + $0xa8] sm:$0xff]
        %v1680 = vld [vmem:[%s1657 + $0xb0] sm:$0xff]
        %v1681 = vld [vmem:[%s1657 + $0xb8] sm:$0xff]
        %v1682 = vld [vmem:[%s1657 + $0xc0] sm:$0xff]
        %v1683 = vld [vmem:[%s1657 + $0xc8] sm:$0xff]
        %v1684 = vld [vmem:[%s1657 + $0xd0] sm:$0xff]
        %v1685 = vld [vmem:[%s1657 + $0xd8] sm:$0xff]
        %v1686 = vld [vmem:[%s1657 + $0xe0] sm:$0xff]
        %v1687 = vld [vmem:[%s1657 + $0xe8] sm:$0xff]
        %v1688 = vld [vmem:[%s1657 + $0xf0] sm:$0xff]
        %v1689 = vld [vmem:[%s1657 + $0xf8] sm:$0xff]
        %v1690 = vld [vmem:[%s1657 + $0x100] sm:$0xff]
        %v1691 = vld [vmem:[%s1657 + $0x108] sm:$0xff]
        %v1692 = vld [vmem:[%s1657 + $0x110] sm:$0xff]
        %v1693 = vld [vmem:[%s1657 + $0x118] sm:$0xff]
        %v1694 = vld [vmem:[%s1657 + $0x120] sm:$0xff]
        %v1695 = vld [vmem:[%s1657 + $0x128] sm:$0xff]
        %v1696 = vld [vmem:[%s1657 + $0x130] sm:$0xff]
        %v1697 = vld [vmem:[%s1657 + $0x138] sm:$0xff]
        %v1698 = vld [vmem:[%s1657 + $0x140] sm:$0xff]
        %v1699 = vld [vmem:[%s1657 + $0x148] sm:$0xff]
        %v1700 = vld [vmem:[%s1657 + $0x150] sm:$0xff]
        %v1701 = vld [vmem:[%s1657 + $0x158] sm:$0xff]
        %v1702 = vld [vmem:[%s1657 + $0x160] sm:$0xff]
        %v1703 = vld [vmem:[%s1657 + $0x168] sm:$0xff]
        %v1704 = vld [vmem:[%s1657 + $0x170] sm:$0xff]
        %v1705 = vld [vmem:[%s1657 + $0x178] sm:$0xff]
        %v1706 = vld [vmem:[%s1657 + $0x180] sm:$0xff]
        %v1707 = vld [vmem:[%s1657 + $0x188] sm:$0xff]
        %v1708 = vld [vmem:[%s1657 + $0x190] sm:$0xff]
        %v1709 = vld [vmem:[%s1657 + $0x198] sm:$0xff]
        %v1710 = vld [vmem:[%s1657 + $0x1a0] sm:$0xff]
        %v1711 = vld [vmem:[%s1657 + $0x1a8] sm:$0xff]
        %v1712 = vld [vmem:[%s1657 + $0x1b0] sm:$0xff]
        %v1713 = vld [vmem:[%s1657 + $0x1b8] sm:$0xff]
        %v1714 = vld [vmem:[%s1657 + $0x1c0] sm:$0xff]
        %v1715 = vld [vmem:[%s1657 + $0x1c8] sm:$0xff]
        %v1716 = vld [vmem:[%s1657 + $0x1d0] sm:$0xff]
        %v1717 = vld [vmem:[%s1657 + $0x1d8] sm:$0xff]
        %v1718 = vld [vmem:[%s1657 + $0x1e0] sm:$0xff]
        %v1719 = vld [vmem:[%s1657 + $0x1e8] sm:$0xff]
        %v1720 = vld [vmem:[%s1657 + $0x1f0] sm:$0xff]
        %v1721 = vld [vmem:[%s1657 + $0x1f8] sm:$0xff]
        %1722 = vmatpush.msra.mxu0 %v1688
        %1723 = vmatpush.msra.mxu0 %v1686
        %1724 = vmatpush.msra.mxu0 %v1684
        %1725 = vmatpush.msra.mxu0 %v1682
        %1726 = vmatpush.msra.mxu0 %v1680
        %1727 = vmatpush.msra.mxu0 %v1678
        %1728 = vmatpush.msra.mxu0 %v1676
        %1729 = vmatpush.msra.mxu0 %v1674
        %1730 = vmatpush.msra.mxu0 %v1672
        %1731 = vmatpush.msra.mxu0 %v1670
        %1732 = vmatpush.msra.mxu0 %v1668
        %1733 = vmatpush.msra.mxu0 %v1666
        %1734 = vmatpush.msra.mxu0 %v1664
        %1735 = vmatpush.msra.mxu0 %v1662
        %1736 = vmatpush.msra.mxu0 %v1660
        %1737 = vmatpush.msra.mxu0 %v1658
        %1738 = vmatmul.f32.gmra.mxu0 %v1603
        %v1739 = vpop.f32.mrf.mxu0
        %v1740 = vadd.f32 0.0, %v1739
        %1741 = vmatmul.f32.gmra.mxu0 %v1608
        %v1742 = vpop.f32.mrf.mxu0
        %v1743 = vadd.f32 0.0, %v1742
        %1744 = vmatmul.f32.gmra.mxu0 %v1613
        %v1745 = vpop.f32.mrf.mxu0
        %v1746 = vadd.f32 0.0, %v1745
        %1747 = vmatmul.f32.gmra.mxu0 %v1618
        %v1748 = vpop.f32.mrf.mxu0
        %v1749 = vadd.f32 0.0, %v1748
        %1750 = vmatmul.f32.gmra.mxu0 %v1623
        %v1751 = vpop.f32.mrf.mxu0
        %v1752 = vadd.f32 0.0, %v1751
        %1753 = vmatmul.f32.gmra.mxu0 %v1628
        %v1754 = vpop.f32.mrf.mxu0
        %v1755 = vadd.f32 0.0, %v1754
        %1756 = vmatmul.f32.gmra.mxu0 %v1633
        %v1757 = vpop.f32.mrf.mxu0
        %v1758 = vadd.f32 0.0, %v1757
        %1759 = vmatmul.f32.gmra.mxu0 %v1638
        %v1760 = vpop.f32.mrf.mxu0
        %v1761 = vadd.f32 0.0, %v1760
        %1762 = vdwg.mxu0
        %1763 = vmatpush.msra.mxu0 %v1720
        %1764 = vmatpush.msra.mxu0 %v1718
        %1765 = vmatpush.msra.mxu0 %v1716
        %1766 = vmatpush.msra.mxu0 %v1714
        %1767 = vmatpush.msra.mxu0 %v1712
        %1768 = vmatpush.msra.mxu0 %v1710
        %1769 = vmatpush.msra.mxu0 %v1708
        %1770 = vmatpush.msra.mxu0 %v1706
        %1771 = vmatpush.msra.mxu0 %v1704
        %1772 = vmatpush.msra.mxu0 %v1702
        %1773 = vmatpush.msra.mxu0 %v1700
        %1774 = vmatpush.msra.mxu0 %v1698
        %1775 = vmatpush.msra.mxu0 %v1696
        %1776 = vmatpush.msra.mxu0 %v1694
        %1777 = vmatpush.msra.mxu0 %v1692
        %1778 = vmatpush.msra.mxu0 %v1690
        %1779 = vmatmul.f32.gmra.mxu0 %v1606
        %v1780 = vpop.f32.mrf.mxu0
        %v1781 = vadd.f32 %v1740, %v1780
        %1782 = vmatmul.f32.gmra.mxu0 %v1610
        %v1783 = vpop.f32.mrf.mxu0
        %v1784 = vadd.f32 %v1743, %v1783
        %1785 = vmatmul.f32.gmra.mxu0 %v1616
        %v1786 = vpop.f32.mrf.mxu0
        %v1787 = vadd.f32 %v1746, %v1786
        %1788 = vmatmul.f32.gmra.mxu0 %v1620
        %v1789 = vpop.f32.mrf.mxu0
        %v1790 = vadd.f32 %v1749, %v1789
        %1791 = vmatmul.f32.gmra.mxu0 %v1626
        %v1792 = vpop.f32.mrf.mxu0
        %v1793 = vadd.f32 %v1752, %v1792
        %1794 = vmatmul.f32.gmra.mxu0 %v1630
        %v1795 = vpop.f32.mrf.mxu0
        %v1796 = vadd.f32 %v1755, %v1795
        %1797 = vmatmul.f32.gmra.mxu0 %v1636
        %v1798 = vpop.f32.mrf.mxu0
        %v1799 = vadd.f32 %v1758, %v1798
        %1800 = vmatmul.f32.gmra.mxu0 %v1640
        %v1801 = vpop.f32.mrf.mxu0
        %v1802 = vadd.f32 %v1761, %v1801
        %1803 = vdwg.mxu0
        %1804 = vmatpush.msra.mxu0 %v1689
        %1805 = vmatpush.msra.mxu0 %v1687
        %1806 = vmatpush.msra.mxu0 %v1685
        %1807 = vmatpush.msra.mxu0 %v1683
        %1808 = vmatpush.msra.mxu0 %v1681
        %1809 = vmatpush.msra.mxu0 %v1679
        %1810 = vmatpush.msra.mxu0 %v1677
        %1811 = vmatpush.msra.mxu0 %v1675
        %1812 = vmatpush.msra.mxu0 %v1673
        %1813 = vmatpush.msra.mxu0 %v1671
        %1814 = vmatpush.msra.mxu0 %v1669
        %1815 = vmatpush.msra.mxu0 %v1667
        %1816 = vmatpush.msra.mxu0 %v1665
        %1817 = vmatpush.msra.mxu0 %v1663
        %1818 = vmatpush.msra.mxu0 %v1661
        %1819 = vmatpush.msra.mxu0 %v1659
        %1820 = vmatmul.f32.gmra.mxu0 %v1603
        %v1821 = vpop.f32.mrf.mxu0
        %v1822 = vadd.f32 0.0, %v1821
        %1823 = vmatmul.f32.gmra.mxu0 %v1608
        %v1824 = vpop.f32.mrf.mxu0
        %v1825 = vadd.f32 0.0, %v1824
        %1826 = vmatmul.f32.gmra.mxu0 %v1613
        %v1827 = vpop.f32.mrf.mxu0
        %v1828 = vadd.f32 0.0, %v1827
        %1829 = vmatmul.f32.gmra.mxu0 %v1618
        %v1830 = vpop.f32.mrf.mxu0
        %v1831 = vadd.f32 0.0, %v1830
        %1832 = vmatmul.f32.gmra.mxu0 %v1623
        %v1833 = vpop.f32.mrf.mxu0
        %v1834 = vadd.f32 0.0, %v1833
        %1835 = vmatmul.f32.gmra.mxu0 %v1628
        %v1836 = vpop.f32.mrf.mxu0
        %v1837 = vadd.f32 0.0, %v1836
        %1838 = vmatmul.f32.gmra.mxu0 %v1633
        %v1839 = vpop.f32.mrf.mxu0
        %v1840 = vadd.f32 0.0, %v1839
        %1841 = vmatmul.f32.gmra.mxu0 %v1638
        %v1842 = vpop.f32.mrf.mxu0
        %v1843 = vadd.f32 0.0, %v1842
        %1844 = vdwg.mxu0
        %1845 = vmatpush.msra.mxu0 %v1721
        %1846 = vmatpush.msra.mxu0 %v1719
        %1847 = vmatpush.msra.mxu0 %v1717
        %1848 = vmatpush.msra.mxu0 %v1715
        %1849 = vmatpush.msra.mxu0 %v1713
        %1850 = vmatpush.msra.mxu0 %v1711
        %1851 = vmatpush.msra.mxu0 %v1709
        %1852 = vmatpush.msra.mxu0 %v1707
        %1853 = vmatpush.msra.mxu0 %v1705
        %1854 = vmatpush.msra.mxu0 %v1703
        %1855 = vmatpush.msra.mxu0 %v1701
        %1856 = vmatpush.msra.mxu0 %v1699
        %1857 = vmatpush.msra.mxu0 %v1697
        %1858 = vmatpush.msra.mxu0 %v1695
        %1859 = vmatpush.msra.mxu0 %v1693
        %1860 = vmatpush.msra.mxu0 %v1691
        %1861 = vmatmul.f32.gmra.mxu0 %v1606
        %v1862 = vpop.f32.mrf.mxu0
        %v1863 = vadd.f32 %v1822, %v1862
        %1864 = vmatmul.f32.gmra.mxu0 %v1610
        %v1865 = vpop.f32.mrf.mxu0
        %v1866 = vadd.f32 %v1825, %v1865
        %1867 = vmatmul.f32.gmra.mxu0 %v1616
        %v1868 = vpop.f32.mrf.mxu0
        %v1869 = vadd.f32 %v1828, %v1868
        %1870 = vmatmul.f32.gmra.mxu0 %v1620
        %v1871 = vpop.f32.mrf.mxu0
        %v1872 = vadd.f32 %v1831, %v1871
        %1873 = vmatmul.f32.gmra.mxu0 %v1626
        %v1874 = vpop.f32.mrf.mxu0
        %v1875 = vadd.f32 %v1834, %v1874
        %1876 = vmatmul.f32.gmra.mxu0 %v1630
        %v1877 = vpop.f32.mrf.mxu0
        %v1878 = vadd.f32 %v1837, %v1877
        %1879 = vmatmul.f32.gmra.mxu0 %v1636
        %v1880 = vpop.f32.mrf.mxu0
        %v1881 = vadd.f32 %v1840, %v1880
        %1882 = vmatmul.f32.gmra.mxu0 %v1640
        %v1883 = vpop.f32.mrf.mxu0
        %v1884 = vadd.f32 %v1843, %v1883
        %1885 = vdwg.mxu0
        %1886 = vmatpush.msra.mxu0 %v1527
        %1887 = vmatpush.msra.mxu0 %v1525
        %1888 = vmatpush.msra.mxu0 %v1523
        %1889 = vmatpush.msra.mxu0 %v1521
        %1890 = vmatpush.msra.mxu0 %v1519
        %1891 = vmatpush.msra.mxu0 %v1517
        %1892 = vmatpush.msra.mxu0 %v1515
        %1893 = vmatpush.msra.mxu0 %v1513
        %1894 = vmatpush.msra.mxu0 %v1511
        %1895 = vmatpush.msra.mxu0 %v1509
        %1896 = vmatpush.msra.mxu0 %v1507
        %1897 = vmatpush.msra.mxu0 %v1505
        %1898 = vmatpush.msra.mxu0 %v1503
        %1899 = vmatpush.msra.mxu0 %v1501
        %1900 = vmatpush.msra.mxu0 %v1499
        %1901 = vmatpush.msra.mxu0 %v1497
        %1902 = vmatmul.f32.gmra.mxu0 %v1481
        %v1903 = vpop.f32.mrf.mxu0
        %v1904 = vadd.f32 %v1781, %v1903
        %1905 = vmatmul.f32.gmra.mxu0 %v1483
        %v1906 = vpop.f32.mrf.mxu0
        %v1907 = vadd.f32 %v1784, %v1906
        %1908 = vmatmul.f32.gmra.mxu0 %v1485
        %v1909 = vpop.f32.mrf.mxu0
        %v1910 = vadd.f32 %v1787, %v1909
        %1911 = vmatmul.f32.gmra.mxu0 %v1487
        %v1912 = vpop.f32.mrf.mxu0
        %v1913 = vadd.f32 %v1790, %v1912
        %1914 = vmatmul.f32.gmra.mxu0 %v1489
        %v1915 = vpop.f32.mrf.mxu0
        %v1916 = vadd.f32 %v1793, %v1915
        %1917 = vmatmul.f32.gmra.mxu0 %v1491
        %v1918 = vpop.f32.mrf.mxu0
        %v1919 = vadd.f32 %v1796, %v1918
        %1920 = vmatmul.f32.gmra.mxu0 %v1493
        %v1921 = vpop.f32.mrf.mxu0
        %v1922 = vadd.f32 %v1799, %v1921
        %1923 = vmatmul.f32.gmra.mxu0 %v1495
        %v1924 = vpop.f32.mrf.mxu0
        %v1925 = vadd.f32 %v1802, %v1924
        %1926 = vdwg.mxu0
        %1927 = vmatpush.msra.mxu0 %v1559
        %1928 = vmatpush.msra.mxu0 %v1557
        %1929 = vmatpush.msra.mxu0 %v1555
        %1930 = vmatpush.msra.mxu0 %v1553
        %1931 = vmatpush.msra.mxu0 %v1551
        %1932 = vmatpush.msra.mxu0 %v1549
        %1933 = vmatpush.msra.mxu0 %v1547
        %1934 = vmatpush.msra.mxu0 %v1545
        %1935 = vmatpush.msra.mxu0 %v1543
        %1936 = vmatpush.msra.mxu0 %v1541
        %1937 = vmatpush.msra.mxu0 %v1539
        %1938 = vmatpush.msra.mxu0 %v1537
        %1939 = vmatpush.msra.mxu0 %v1535
        %1940 = vmatpush.msra.mxu0 %v1533
        %1941 = vmatpush.msra.mxu0 %v1531
        %1942 = vmatpush.msra.mxu0 %v1529
        %1943 = vmatmul.f32.gmra.mxu0 %v1482
        %v1944 = vpop.f32.mrf.mxu0
        %v1945 = vadd.f32 %v1904, %v1944
        %1946 = vmatmul.f32.gmra.mxu0 %v1484
        %v1947 = vpop.f32.mrf.mxu0
        %v1948 = vadd.f32 %v1907, %v1947
        %1949 = vmatmul.f32.gmra.mxu0 %v1486
        %v1950 = vpop.f32.mrf.mxu0
        %v1951 = vadd.f32 %v1910, %v1950
        %1952 = vmatmul.f32.gmra.mxu0 %v1488
        %v1953 = vpop.f32.mrf.mxu0
        %v1954 = vadd.f32 %v1913, %v1953
        %1955 = vmatmul.f32.gmra.mxu0 %v1490
        %v1956 = vpop.f32.mrf.mxu0
        %v1957 = vadd.f32 %v1916, %v1956
        %1958 = vmatmul.f32.gmra.mxu0 %v1492
        %v1959 = vpop.f32.mrf.mxu0
        %v1960 = vadd.f32 %v1919, %v1959
        %1961 = vmatmul.f32.gmra.mxu0 %v1494
        %v1962 = vpop.f32.mrf.mxu0
        %v1963 = vadd.f32 %v1922, %v1962
        %1964 = vmatmul.f32.gmra.mxu0 %v1496
        %v1965 = vpop.f32.mrf.mxu0
        %v1966 = vadd.f32 %v1925, %v1965
        %1967 = vdwg.mxu0
        %1968 = vmatpush.msra.mxu0 %v1528
        %1969 = vmatpush.msra.mxu0 %v1526
        %1970 = vmatpush.msra.mxu0 %v1524
        %1971 = vmatpush.msra.mxu0 %v1522
        %1972 = vmatpush.msra.mxu0 %v1520
        %1973 = vmatpush.msra.mxu0 %v1518
        %1974 = vmatpush.msra.mxu0 %v1516
        %1975 = vmatpush.msra.mxu0 %v1514
        %1976 = vmatpush.msra.mxu0 %v1512
        %1977 = vmatpush.msra.mxu0 %v1510
        %1978 = vmatpush.msra.mxu0 %v1508
        %1979 = vmatpush.msra.mxu0 %v1506
        %1980 = vmatpush.msra.mxu0 %v1504
        %1981 = vmatpush.msra.mxu0 %v1502
        %1982 = vmatpush.msra.mxu0 %v1500
        %1983 = vmatpush.msra.mxu0 %v1498
        %1984 = vmatmul.f32.gmra.mxu0 %v1481
        %v1985 = vpop.f32.mrf.mxu0
        %v1986 = vadd.f32 %v1863, %v1985
        %1987 = vmatmul.f32.gmra.mxu0 %v1483
        %v1988 = vpop.f32.mrf.mxu0
        %v1989 = vadd.f32 %v1866, %v1988
        %1990 = vmatmul.f32.gmra.mxu0 %v1485
        %v1991 = vpop.f32.mrf.mxu0
        %v1992 = vadd.f32 %v1869, %v1991
        %1993 = vmatmul.f32.gmra.mxu0 %v1487
        %v1994 = vpop.f32.mrf.mxu0
        %v1995 = vadd.f32 %v1872, %v1994
        %1996 = vmatmul.f32.gmra.mxu0 %v1489
        %v1997 = vpop.f32.mrf.mxu0
        %v1998 = vadd.f32 %v1875, %v1997
        %1999 = vmatmul.f32.gmra.mxu0 %v1491
        %v2000 = vpop.f32.mrf.mxu0
        %v2001 = vadd.f32 %v1878, %v2000
        %2002 = vmatmul.f32.gmra.mxu0 %v1493
        %v2003 = vpop.f32.mrf.mxu0
        %v2004 = vadd.f32 %v1881, %v2003
        %2005 = vmatmul.f32.gmra.mxu0 %v1495
        %v2006 = vpop.f32.mrf.mxu0
        %v2007 = vadd.f32 %v1884, %v2006
        %2008 = vdwg.mxu0
        %2009 = vmatpush.msra.mxu0 %v1560
        %2010 = vmatpush.msra.mxu0 %v1558
        %2011 = vmatpush.msra.mxu0 %v1556
        %2012 = vmatpush.msra.mxu0 %v1554
        %2013 = vmatpush.msra.mxu0 %v1552
        %2014 = vmatpush.msra.mxu0 %v1550
        %2015 = vmatpush.msra.mxu0 %v1548
        %2016 = vmatpush.msra.mxu0 %v1546
        %2017 = vmatpush.msra.mxu0 %v1544
        %2018 = vmatpush.msra.mxu0 %v1542
        %2019 = vmatpush.msra.mxu0 %v1540
        %2020 = vmatpush.msra.mxu0 %v1538
        %2021 = vmatpush.msra.mxu0 %v1536
        %2022 = vmatpush.msra.mxu0 %v1534
        %2023 = vmatpush.msra.mxu0 %v1532
        %2024 = vmatpush.msra.mxu0 %v1530
        %2025 = vmatmul.f32.gmra.mxu0 %v1482
        %v2026 = vpop.f32.mrf.mxu0
        %v2027 = vadd.f32 %v1986, %v2026
        %2028 = vmatmul.f32.gmra.mxu0 %v1484
        %v2029 = vpop.f32.mrf.mxu0
        %v2030 = vadd.f32 %v1989, %v2029
        %2031 = vmatmul.f32.gmra.mxu0 %v1486
        %v2032 = vpop.f32.mrf.mxu0
        %v2033 = vadd.f32 %v1992, %v2032
        %2034 = vmatmul.f32.gmra.mxu0 %v1488
        %v2035 = vpop.f32.mrf.mxu0
        %v2036 = vadd.f32 %v1995, %v2035
        %2037 = vmatmul.f32.gmra.mxu0 %v1490
        %v2038 = vpop.f32.mrf.mxu0
        %v2039 = vadd.f32 %v1998, %v2038
        %2040 = vmatmul.f32.gmra.mxu0 %v1492
        %v2041 = vpop.f32.mrf.mxu0
        %v2042 = vadd.f32 %v2001, %v2041
        %2043 = vmatmul.f32.gmra.mxu0 %v1494
        %v2044 = vpop.f32.mrf.mxu0
        %v2045 = vadd.f32 %v2004, %v2044
        %2046 = vmatmul.f32.gmra.mxu0 %v1496
        %v2047 = vpop.f32.mrf.mxu0
        %v2048 = vadd.f32 %v2007, %v2047
        %2049 = vdwg.mxu0
        %v2050 = vld [vmem:[#allocation3] sm:$0xfc]
        %v2051 = vld [vmem:[#allocation3 + $0x8] sm:$0xfc]
        %v2052 = vld [vmem:[#allocation3 + $0x20] sm:$0x3]
        %v2053 = vld [vmem:[#allocation3 + $0x28] sm:$0x3]
        %v2054 = vld [vmem:[#allocation3 + $0x30] sm:$0xfc]
        %v2055 = vld [vmem:[#allocation3 + $0x38] sm:$0xfc]
        %v2056 = vld [vmem:[#allocation3 + $0x50] sm:$0x3]
        %v2057 = vld [vmem:[#allocation3 + $0x58] sm:$0x3]
        %v2058 = vld [vmem:[#allocation3 + $0x60] sm:$0xfc]
        %v2059 = vld [vmem:[#allocation3 + $0x68] sm:$0xfc]
        %v2060 = vld [vmem:[#allocation3 + $0x80] sm:$0x3]
        %v2061 = vld [vmem:[#allocation3 + $0x88] sm:$0x3]
        %v2062 = vld [vmem:[#allocation3 + $0x90] sm:$0xfc]
        %v2063 = vld [vmem:[#allocation3 + $0x98] sm:$0xfc]
        %v2064 = vld [vmem:[#allocation3 + $0xb0] sm:$0x3]
        %v2065 = vld [vmem:[#allocation3 + $0xb8] sm:$0x3]
        %v2082 = vrot.slane %v2050, 2
        %v2083 = vrot.slane %v1483, 2
        %v2084 = vsel %vm1030, %v2082, %v2083
        %v2085 = vrot.slane %v2051, 2
        %v2086 = vrot.slane %v1484, 2
        %v2087 = vsel %vm1030, %v2085, %v2086
        %v2088 = vrot.slane %v2052, 2
        %v2089 = vsel %vm1030, %v2083, %v2088
        %v2090 = vrot.slane %v2053, 2
        %v2091 = vsel %vm1030, %v2086, %v2090
        %v2092 = vrot.slane %v2054, 2
        %v2093 = vrot.slane %v1487, 2
        %v2094 = vsel %vm1030, %v2092, %v2093
        %v2095 = vrot.slane %v2055, 2
        %v2096 = vrot.slane %v1488, 2
        %v2097 = vsel %vm1030, %v2095, %v2096
        %v2098 = vrot.slane %v2056, 2
        %v2099 = vsel %vm1030, %v2093, %v2098
        %v2100 = vrot.slane %v2057, 2
        %v2101 = vsel %vm1030, %v2096, %v2100
        %v2102 = vrot.slane %v2058, 2
        %v2103 = vrot.slane %v1491, 2
        %v2104 = vsel %vm1030, %v2102, %v2103
        %v2105 = vrot.slane %v2059, 2
        %v2106 = vrot.slane %v1492, 2
        %v2107 = vsel %vm1030, %v2105, %v2106
        %v2108 = vrot.slane %v2060, 2
        %v2109 = vsel %vm1030, %v2103, %v2108
        %v2110 = vrot.slane %v2061, 2
        %v2111 = vsel %vm1030, %v2106, %v2110
        %v2112 = vrot.slane %v2062, 2
        %v2113 = vrot.slane %v1495, 2
        %v2114 = vsel %vm1030, %v2112, %v2113
        %v2115 = vrot.slane %v2063, 2
        %v2116 = vrot.slane %v1496, 2
        %v2117 = vsel %vm1030, %v2115, %v2116
        %v2118 = vrot.slane %v2064, 2
        %v2119 = vsel %vm1030, %v2113, %v2118
        %v2120 = vrot.slane %v2065, 2
        %v2121 = vsel %vm1030, %v2116, %v2120
        %s2138 = scalar_lea.vmem [#allocation9], 1024
        %v2139 = vld [vmem:[%s2138] sm:$0xff]
        %v2140 = vld [vmem:[%s2138 + $0x8] sm:$0xff]
        %v2141 = vld [vmem:[%s2138 + $0x10] sm:$0xff]
        %v2142 = vld [vmem:[%s2138 + $0x18] sm:$0xff]
        %v2143 = vld [vmem:[%s2138 + $0x20] sm:$0xff]
        %v2144 = vld [vmem:[%s2138 + $0x28] sm:$0xff]
        %v2145 = vld [vmem:[%s2138 + $0x30] sm:$0xff]
        %v2146 = vld [vmem:[%s2138 + $0x38] sm:$0xff]
        %v2147 = vld [vmem:[%s2138 + $0x40] sm:$0xff]
        %v2148 = vld [vmem:[%s2138 + $0x48] sm:$0xff]
        %v2149 = vld [vmem:[%s2138 + $0x50] sm:$0xff]
        %v2150 = vld [vmem:[%s2138 + $0x58] sm:$0xff]
        %v2151 = vld [vmem:[%s2138 + $0x60] sm:$0xff]
        %v2152 = vld [vmem:[%s2138 + $0x68] sm:$0xff]
        %v2153 = vld [vmem:[%s2138 + $0x70] sm:$0xff]
        %v2154 = vld [vmem:[%s2138 + $0x78] sm:$0xff]
        %v2155 = vld [vmem:[%s2138 + $0x80] sm:$0xff]
        %v2156 = vld [vmem:[%s2138 + $0x88] sm:$0xff]
        %v2157 = vld [vmem:[%s2138 + $0x90] sm:$0xff]
        %v2158 = vld [vmem:[%s2138 + $0x98] sm:$0xff]
        %v2159 = vld [vmem:[%s2138 + $0xa0] sm:$0xff]
        %v2160 = vld [vmem:[%s2138 + $0xa8] sm:$0xff]
        %v2161 = vld [vmem:[%s2138 + $0xb0] sm:$0xff]
        %v2162 = vld [vmem:[%s2138 + $0xb8] sm:$0xff]
        %v2163 = vld [vmem:[%s2138 + $0xc0] sm:$0xff]
        %v2164 = vld [vmem:[%s2138 + $0xc8] sm:$0xff]
        %v2165 = vld [vmem:[%s2138 + $0xd0] sm:$0xff]
        %v2166 = vld [vmem:[%s2138 + $0xd8] sm:$0xff]
        %v2167 = vld [vmem:[%s2138 + $0xe0] sm:$0xff]
        %v2168 = vld [vmem:[%s2138 + $0xe8] sm:$0xff]
        %v2169 = vld [vmem:[%s2138 + $0xf0] sm:$0xff]
        %v2170 = vld [vmem:[%s2138 + $0xf8] sm:$0xff]
        %v2171 = vld [vmem:[%s2138 + $0x100] sm:$0xff]
        %v2172 = vld [vmem:[%s2138 + $0x108] sm:$0xff]
        %v2173 = vld [vmem:[%s2138 + $0x110] sm:$0xff]
        %v2174 = vld [vmem:[%s2138 + $0x118] sm:$0xff]
        %v2175 = vld [vmem:[%s2138 + $0x120] sm:$0xff]
        %v2176 = vld [vmem:[%s2138 + $0x128] sm:$0xff]
        %v2177 = vld [vmem:[%s2138 + $0x130] sm:$0xff]
        %v2178 = vld [vmem:[%s2138 + $0x138] sm:$0xff]
        %v2179 = vld [vmem:[%s2138 + $0x140] sm:$0xff]
        %v2180 = vld [vmem:[%s2138 + $0x148] sm:$0xff]
        %v2181 = vld [vmem:[%s2138 + $0x150] sm:$0xff]
        %v2182 = vld [vmem:[%s2138 + $0x158] sm:$0xff]
        %v2183 = vld [vmem:[%s2138 + $0x160] sm:$0xff]
        %v2184 = vld [vmem:[%s2138 + $0x168] sm:$0xff]
        %v2185 = vld [vmem:[%s2138 + $0x170] sm:$0xff]
        %v2186 = vld [vmem:[%s2138 + $0x178] sm:$0xff]
        %v2187 = vld [vmem:[%s2138 + $0x180] sm:$0xff]
        %v2188 = vld [vmem:[%s2138 + $0x188] sm:$0xff]
        %v2189 = vld [vmem:[%s2138 + $0x190] sm:$0xff]
        %v2190 = vld [vmem:[%s2138 + $0x198] sm:$0xff]
        %v2191 = vld [vmem:[%s2138 + $0x1a0] sm:$0xff]
        %v2192 = vld [vmem:[%s2138 + $0x1a8] sm:$0xff]
        %v2193 = vld [vmem:[%s2138 + $0x1b0] sm:$0xff]
        %v2194 = vld [vmem:[%s2138 + $0x1b8] sm:$0xff]
        %v2195 = vld [vmem:[%s2138 + $0x1c0] sm:$0xff]
        %v2196 = vld [vmem:[%s2138 + $0x1c8] sm:$0xff]
        %v2197 = vld [vmem:[%s2138 + $0x1d0] sm:$0xff]
        %v2198 = vld [vmem:[%s2138 + $0x1d8] sm:$0xff]
        %v2199 = vld [vmem:[%s2138 + $0x1e0] sm:$0xff]
        %v2200 = vld [vmem:[%s2138 + $0x1e8] sm:$0xff]
        %v2201 = vld [vmem:[%s2138 + $0x1f0] sm:$0xff]
        %v2202 = vld [vmem:[%s2138 + $0x1f8] sm:$0xff]
        %2203 = vmatpush.msra.mxu0 %v2169
        %2204 = vmatpush.msra.mxu0 %v2167
        %2205 = vmatpush.msra.mxu0 %v2165
        %2206 = vmatpush.msra.mxu0 %v2163
        %2207 = vmatpush.msra.mxu0 %v2161
        %2208 = vmatpush.msra.mxu0 %v2159
        %2209 = vmatpush.msra.mxu0 %v2157
        %2210 = vmatpush.msra.mxu0 %v2155
        %2211 = vmatpush.msra.mxu0 %v2153
        %2212 = vmatpush.msra.mxu0 %v2151
        %2213 = vmatpush.msra.mxu0 %v2149
        %2214 = vmatpush.msra.mxu0 %v2147
        %2215 = vmatpush.msra.mxu0 %v2145
        %2216 = vmatpush.msra.mxu0 %v2143
        %2217 = vmatpush.msra.mxu0 %v2141
        %2218 = vmatpush.msra.mxu0 %v2139
        %2219 = vmatmul.f32.gmra.mxu0 %v2084
        %v2220 = vpop.f32.mrf.mxu0
        %v2221 = vadd.f32 0.0, %v2220
        %2222 = vmatmul.f32.gmra.mxu0 %v2089
        %v2223 = vpop.f32.mrf.mxu0
        %v2224 = vadd.f32 0.0, %v2223
        %2225 = vmatmul.f32.gmra.mxu0 %v2094
        %v2226 = vpop.f32.mrf.mxu0
        %v2227 = vadd.f32 0.0, %v2226
        %2228 = vmatmul.f32.gmra.mxu0 %v2099
        %v2229 = vpop.f32.mrf.mxu0
        %v2230 = vadd.f32 0.0, %v2229
        %2231 = vmatmul.f32.gmra.mxu0 %v2104
        %v2232 = vpop.f32.mrf.mxu0
        %v2233 = vadd.f32 0.0, %v2232
        %2234 = vmatmul.f32.gmra.mxu0 %v2109
        %v2235 = vpop.f32.mrf.mxu0
        %v2236 = vadd.f32 0.0, %v2235
        %2237 = vmatmul.f32.gmra.mxu0 %v2114
        %v2238 = vpop.f32.mrf.mxu0
        %v2239 = vadd.f32 0.0, %v2238
        %2240 = vmatmul.f32.gmra.mxu0 %v2119
        %v2241 = vpop.f32.mrf.mxu0
        %v2242 = vadd.f32 0.0, %v2241
        %2243 = vdwg.mxu0
        %2244 = vmatpush.msra.mxu0 %v2201
        %2245 = vmatpush.msra.mxu0 %v2199
        %2246 = vmatpush.msra.mxu0 %v2197
        %2247 = vmatpush.msra.mxu0 %v2195
        %2248 = vmatpush.msra.mxu0 %v2193
        %2249 = vmatpush.msra.mxu0 %v2191
        %2250 = vmatpush.msra.mxu0 %v2189
        %2251 = vmatpush.msra.mxu0 %v2187
        %2252 = vmatpush.msra.mxu0 %v2185
        %2253 = vmatpush.msra.mxu0 %v2183
        %2254 = vmatpush.msra.mxu0 %v2181
        %2255 = vmatpush.msra.mxu0 %v2179
        %2256 = vmatpush.msra.mxu0 %v2177
        %2257 = vmatpush.msra.mxu0 %v2175
        %2258 = vmatpush.msra.mxu0 %v2173
        %2259 = vmatpush.msra.mxu0 %v2171
        %2260 = vmatmul.f32.gmra.mxu0 %v2087
        %v2261 = vpop.f32.mrf.mxu0
        %v2262 = vadd.f32 %v2221, %v2261
        %2263 = vmatmul.f32.gmra.mxu0 %v2091
        %v2264 = vpop.f32.mrf.mxu0
        %v2265 = vadd.f32 %v2224, %v2264
        %2266 = vmatmul.f32.gmra.mxu0 %v2097
        %v2267 = vpop.f32.mrf.mxu0
        %v2268 = vadd.f32 %v2227, %v2267
        %2269 = vmatmul.f32.gmra.mxu0 %v2101
        %v2270 = vpop.f32.mrf.mxu0
        %v2271 = vadd.f32 %v2230, %v2270
        %2272 = vmatmul.f32.gmra.mxu0 %v2107
        %v2273 = vpop.f32.mrf.mxu0
        %v2274 = vadd.f32 %v2233, %v2273
        %2275 = vmatmul.f32.gmra.mxu0 %v2111
        %v2276 = vpop.f32.mrf.mxu0
        %v2277 = vadd.f32 %v2236, %v2276
        %2278 = vmatmul.f32.gmra.mxu0 %v2117
        %v2279 = vpop.f32.mrf.mxu0
        %v2280 = vadd.f32 %v2239, %v2279
        %2281 = vmatmul.f32.gmra.mxu0 %v2121
        %v2282 = vpop.f32.mrf.mxu0
        %v2283 = vadd.f32 %v2242, %v2282
        %2284 = vdwg.mxu0
        %2285 = vmatpush.msra.mxu0 %v2170
        %2286 = vmatpush.msra.mxu0 %v2168
        %2287 = vmatpush.msra.mxu0 %v2166
        %2288 = vmatpush.msra.mxu0 %v2164
        %2289 = vmatpush.msra.mxu0 %v2162
        %2290 = vmatpush.msra.mxu0 %v2160
        %2291 = vmatpush.msra.mxu0 %v2158
        %2292 = vmatpush.msra.mxu0 %v2156
        %2293 = vmatpush.msra.mxu0 %v2154
        %2294 = vmatpush.msra.mxu0 %v2152
        %2295 = vmatpush.msra.mxu0 %v2150
        %2296 = vmatpush.msra.mxu0 %v2148
        %2297 = vmatpush.msra.mxu0 %v2146
        %2298 = vmatpush.msra.mxu0 %v2144
        %2299 = vmatpush.msra.mxu0 %v2142
        %2300 = vmatpush.msra.mxu0 %v2140
        %2301 = vmatmul.f32.gmra.mxu0 %v2084
        %v2302 = vpop.f32.mrf.mxu0
        %v2303 = vadd.f32 0.0, %v2302
        %2304 = vmatmul.f32.gmra.mxu0 %v2089
        %v2305 = vpop.f32.mrf.mxu0
        %v2306 = vadd.f32 0.0, %v2305
        %2307 = vmatmul.f32.gmra.mxu0 %v2094
        %v2308 = vpop.f32.mrf.mxu0
        %v2309 = vadd.f32 0.0, %v2308
        %2310 = vmatmul.f32.gmra.mxu0 %v2099
        %v2311 = vpop.f32.mrf.mxu0
        %v2312 = vadd.f32 0.0, %v2311
        %2313 = vmatmul.f32.gmra.mxu0 %v2104
        %v2314 = vpop.f32.mrf.mxu0
        %v2315 = vadd.f32 0.0, %v2314
        %2316 = vmatmul.f32.gmra.mxu0 %v2109
        %v2317 = vpop.f32.mrf.mxu0
        %v2318 = vadd.f32 0.0, %v2317
        %2319 = vmatmul.f32.gmra.mxu0 %v2114
        %v2320 = vpop.f32.mrf.mxu0
        %v2321 = vadd.f32 0.0, %v2320
        %2322 = vmatmul.f32.gmra.mxu0 %v2119
        %v2323 = vpop.f32.mrf.mxu0
        %v2324 = vadd.f32 0.0, %v2323
        %2325 = vdwg.mxu0
        %2326 = vmatpush.msra.mxu0 %v2202
        %2327 = vmatpush.msra.mxu0 %v2200
        %2328 = vmatpush.msra.mxu0 %v2198
        %2329 = vmatpush.msra.mxu0 %v2196
        %2330 = vmatpush.msra.mxu0 %v2194
        %2331 = vmatpush.msra.mxu0 %v2192
        %2332 = vmatpush.msra.mxu0 %v2190
        %2333 = vmatpush.msra.mxu0 %v2188
        %2334 = vmatpush.msra.mxu0 %v2186
        %2335 = vmatpush.msra.mxu0 %v2184
        %2336 = vmatpush.msra.mxu0 %v2182
        %2337 = vmatpush.msra.mxu0 %v2180
        %2338 = vmatpush.msra.mxu0 %v2178
        %2339 = vmatpush.msra.mxu0 %v2176
        %2340 = vmatpush.msra.mxu0 %v2174
        %2341 = vmatpush.msra.mxu0 %v2172
        %2342 = vmatmul.f32.gmra.mxu0 %v2087
        %v2343 = vpop.f32.mrf.mxu0
        %v2344 = vadd.f32 %v2303, %v2343
        %2345 = vmatmul.f32.gmra.mxu0 %v2091
        %v2346 = vpop.f32.mrf.mxu0
        %v2347 = vadd.f32 %v2306, %v2346
        %2348 = vmatmul.f32.gmra.mxu0 %v2097
        %v2349 = vpop.f32.mrf.mxu0
        %v2350 = vadd.f32 %v2309, %v2349
        %2351 = vmatmul.f32.gmra.mxu0 %v2101
        %v2352 = vpop.f32.mrf.mxu0
        %v2353 = vadd.f32 %v2312, %v2352
        %2354 = vmatmul.f32.gmra.mxu0 %v2107
        %v2355 = vpop.f32.mrf.mxu0
        %v2356 = vadd.f32 %v2315, %v2355
        %2357 = vmatmul.f32.gmra.mxu0 %v2111
        %v2358 = vpop.f32.mrf.mxu0
        %v2359 = vadd.f32 %v2318, %v2358
        %2360 = vmatmul.f32.gmra.mxu0 %v2117
        %v2361 = vpop.f32.mrf.mxu0
        %v2362 = vadd.f32 %v2321, %v2361
        %2363 = vmatmul.f32.gmra.mxu0 %v2121
        %v2364 = vpop.f32.mrf.mxu0
        %v2365 = vadd.f32 %v2324, %v2364
        %2366 = vdwg.mxu0
        %v2367 = vadd.f32 %v1945, %v2262
        %v2368 = vadd.f32 %v2027, %v2344
        %v2369 = vadd.f32 %v1948, %v2265
        %v2370 = vadd.f32 %v2030, %v2347
        %v2371 = vadd.f32 %v1951, %v2268
        %v2372 = vadd.f32 %v2033, %v2350
        %v2373 = vadd.f32 %v1954, %v2271
        %v2374 = vadd.f32 %v2036, %v2353
        %v2375 = vadd.f32 %v1957, %v2274
        %v2376 = vadd.f32 %v2039, %v2356
        %v2377 = vadd.f32 %v1960, %v2277
        %v2378 = vadd.f32 %v2042, %v2359
        %v2379 = vadd.f32 %v1963, %v2280
        %v2380 = vadd.f32 %v2045, %v2362
        %v2381 = vadd.f32 %v1966, %v2283
        %v2382 = vadd.f32 %v2048, %v2365
        %v2383 = vld [vmem:[%s251] sm:$0xff]
        %v2384 = vld [vmem:[%s251 + $0x8] sm:$0xff]
        %v2385 = vld [vmem:[%s251 + $0x10] sm:$0xff]
        %v2386 = vld [vmem:[%s251 + $0x18] sm:$0xff]
        %v2387 = vld [vmem:[%s251 + $0x20] sm:$0xff]
        %v2388 = vld [vmem:[%s251 + $0x28] sm:$0xff]
        %v2389 = vld [vmem:[%s251 + $0x30] sm:$0xff]
        %v2390 = vld [vmem:[%s251 + $0x38] sm:$0xff]
        %v2391 = vld [vmem:[%s251 + $0x40] sm:$0xff]
        %v2392 = vld [vmem:[%s251 + $0x48] sm:$0xff]
        %v2393 = vld [vmem:[%s251 + $0x50] sm:$0xff]
        %v2394 = vld [vmem:[%s251 + $0x58] sm:$0xff]
        %v2395 = vld [vmem:[%s251 + $0x60] sm:$0xff]
        %v2396 = vld [vmem:[%s251 + $0x68] sm:$0xff]
        %v2397 = vld [vmem:[%s251 + $0x70] sm:$0xff]
        %v2398 = vld [vmem:[%s251 + $0x78] sm:$0xff]
        %v2399 = vld [vmem:[#allocation10] sm:$0x3]
        %v2401 = vperm.slane %v2399, 0
        %v2402 = vperm.slane %v2399, 1
        %v2405 = vadd.f32 %v2367, %v2401
        %v2406 = vadd.f32 %v2368, %v2402
        %v2407 = vadd.f32 %v2369, %v2401
        %v2408 = vadd.f32 %v2370, %v2402
        %v2409 = vadd.f32 %v2371, %v2401
        %v2410 = vadd.f32 %v2372, %v2402
        %v2411 = vadd.f32 %v2373, %v2401
        %v2412 = vadd.f32 %v2374, %v2402
        %v2413 = vadd.f32 %v2375, %v2401
        %v2414 = vadd.f32 %v2376, %v2402
        %v2415 = vadd.f32 %v2377, %v2401
        %v2416 = vadd.f32 %v2378, %v2402
        %v2417 = vadd.f32 %v2379, %v2401
        %v2418 = vadd.f32 %v2380, %v2402
        %v2419 = vadd.f32 %v2381, %v2401
        %v2420 = vadd.f32 %v2382, %v2402
        %v2421 = vadd.f32 %v2405, %v2383
        %v2422 = vadd.f32 %v2406, %v2384
        %v2423 = vadd.f32 %v2407, %v2385
        %v2424 = vadd.f32 %v2408, %v2386
        %v2425 = vadd.f32 %v2409, %v2387
        %v2426 = vadd.f32 %v2410, %v2388
        %v2427 = vadd.f32 %v2411, %v2389
        %v2428 = vadd.f32 %v2412, %v2390
        %v2429 = vadd.f32 %v2413, %v2391
        %v2430 = vadd.f32 %v2414, %v2392
        %v2431 = vadd.f32 %v2415, %v2393
        %v2432 = vadd.f32 %v2416, %v2394
        %v2433 = vadd.f32 %v2417, %v2395
        %v2434 = vadd.f32 %v2418, %v2396
        %v2435 = vadd.f32 %v2419, %v2397
        %v2436 = vadd.f32 %v2420, %v2398
        %v2437 = vmax.f32 %v2421, 0.0
        %v2438 = vmax.f32 %v2422, 0.0
        %v2439 = vmax.f32 %v2423, 0.0
        %v2440 = vmax.f32 %v2424, 0.0
        %v2441 = vmax.f32 %v2425, 0.0
        %v2442 = vmax.f32 %v2426, 0.0
        %v2443 = vmax.f32 %v2427, 0.0
        %v2444 = vmax.f32 %v2428, 0.0
        %v2445 = vmax.f32 %v2429, 0.0
        %v2446 = vmax.f32 %v2430, 0.0
        %v2447 = vmax.f32 %v2431, 0.0
        %v2448 = vmax.f32 %v2432, 0.0
        %v2449 = vmax.f32 %v2433, 0.0
        %v2450 = vmax.f32 %v2434, 0.0
        %v2451 = vmax.f32 %v2435, 0.0
        %v2452 = vmax.f32 %v2436, 0.0
        %2453 = vst [vmem:[%s293] sm:$0xff] %v2437
        %2454 = vst [vmem:[%s293 + $0x8] sm:$0xff] %v2438
        %2455 = vst [vmem:[%s293 + $0x10] sm:$0xff] %v2439
        %2456 = vst [vmem:[%s293 + $0x18] sm:$0xff] %v2440
        %2457 = vst [vmem:[%s293 + $0x20] sm:$0xff] %v2441
        %2458 = vst [vmem:[%s293 + $0x28] sm:$0xff] %v2442
        %2459 = vst [vmem:[%s293 + $0x30] sm:$0xff] %v2443
        %2460 = vst [vmem:[%s293 + $0x38] sm:$0xff] %v2444
        %2461 = vst [vmem:[%s293 + $0x40] sm:$0xff] %v2445
        %2462 = vst [vmem:[%s293 + $0x48] sm:$0xff] %v2446
        %2463 = vst [vmem:[%s293 + $0x50] sm:$0xff] %v2447
        %2464 = vst [vmem:[%s293 + $0x58] sm:$0xff] %v2448
        %2465 = vst [vmem:[%s293 + $0x60] sm:$0xff] %v2449
        %2466 = vst [vmem:[%s293 + $0x68] sm:$0xff] %v2450
        %2467 = vst [vmem:[%s293 + $0x70] sm:$0xff] %v2451
        %2468 = vst [vmem:[%s293 + $0x78] sm:$0xff] %v2452
        %s2469 = sand.u32 %s142, 1
        %s2470 = scalar_lea.sflag [#allocation6], %s2469
        %s2471 = sand.u32 %s142, 1
        %s2472 = smul.addr %s2471, 128
        %s2473 = scalar_lea.vmem [#allocation12], %s2472
        // Predicated region
        $region57: #{tpu_custom_call.1} parent=39 // pred_check
          %p2474 = pneg %p152
        $region58: #{tpu_custom_call.1} parent=39 // pred_check_branch
          %2476 = sbr.rel (%p2474) target = $region60
        $region59: #{tpu_custom_call.1} parent=39 // pred_region
          %s2477 = smul.u32 4, %s24
          %2479 = vsyncadd %s2470, 0
          %s2480 = smul.addr %s2477, 4
          %s2481 = smul.addr %s2480, 8
          %s2482 = scalar_lea.hbm %s5, %s2481
          %s2483 = sshll.u32 %s2473, 4
          %s2484 = int_to_ptr.vmem [resolvable:$true] %s2483
          %s2485 = sshll.u32 %s2482, 4
          %s2486 = int_to_ptr.hbm [resolvable:$true] %s2485
          %2491 = dma.vmem_to_hbm [thread:$0]  %s2484, 2048, %s2486, %s2470, 256, 256, 16
        $region60: #{tpu_custom_call.1} parent=39 // pred_fallthru
          _
      $region40: #{tpu_custom_call.1} parent=5 // pred_fallthru
        _
      %p2492 = scmp.le.s32.totalorder 2, %s19
      // Predicated region
      $region61: #{tpu_custom_call.1} parent=5 // pred_check
        %p2493 = pneg %p2492
      $region62: #{tpu_custom_call.1} parent=5 // pred_check_branch
        %2495 = sbr.rel (%p2493) target = $region64
      $region63: #{tpu_custom_call.1} parent=5 // pred_region
        %s2496 = ssub.s32 %s19, 2
        // Predicated region
        $region65: #{tpu_custom_call.1} parent=63 // pred_check
          %p2497 = pneg %p158
        $region66: #{tpu_custom_call.1} parent=63 // pred_check_branch
          %2499 = sbr.rel (%p2497) target = $region68
        $region67: #{tpu_custom_call.1} parent=63 // pred_region
          %s2500 = sand.u32 %s143, 1
          %s2501 = scalar_lea.sflag [#allocation6], %s2500
          %s2502 = sand.u32 %s143, 1
          %s2503 = smul.addr %s2502, 128
          %s2504 = scalar_lea.vmem [#allocation12], %s2503
          %2506 = dma.done %s2501, 2048
        $region68: #{tpu_custom_call.1} parent=63 // pred_fallthru
          _
      $region64: #{tpu_custom_call.1} parent=5 // pred_fallthru
        _
    $region6: #{tpu_custom_call.1} parent=1 // loop_footer
      %s23 = sadd.s32 1, %s19
    $region7: #{tpu_custom_call.1} parent=1 // loop_footer_branch
      %18 = sbr.rel target = $region3
    $region8: #{tpu_custom_call.1} parent=1 // loop_exit
      _
    %2507 = vsyncpa [#allocation5], 1
    %s2508 = scalar_lea.sflag [#allocation5], 1
    %2509 = vsyncpa %s2508, 1
    %2510 = vsyncpa [#allocation8], 1
    %2511 = vsyncpa [#allocation11], 1
    %2512 = vsyncpa [#allocation6], 1
    %s2513 = scalar_lea.sflag [#allocation6], 1
    %2514 = vsyncpa %s2513, 1

</llo_original>
